<compile_context>
chip_gen: v7x
topology: tpu7x:2x2x1
jax: 0.10.0
libtpu: 0.0.40
codegen_flags: <defaults>
</compile_context>

<pallas_src>
import numpy as np
import jax
import jax.numpy as jnp
from jax.experimental import pallas as pl
from jax.experimental.pallas import tpu as pltpu


def _make_kernel(num_cells, neighborhood_size, tm, emb_dim):
    thetas = 2.0 * np.pi * np.arange(num_cells) / num_cells
    dirs = np.stack([np.cos(thetas), np.sin(thetas)], axis=1).astype(np.float32)  # (C, 2)
    ch2 = np.float32(np.cos(np.pi / num_cells) ** 2)                # cos^2(pi/C)
    radius2 = np.float32(neighborhood_size * neighborhood_size)
    eps2 = np.float32(1e-18)                                        # (1e-9)^2

    def kernel(bnd_ref, pos_ref, hid_ref, wray_ref, bs_ref,
               w1e_ref, w1h_ref, b1_ref, w2_ref, b2_ref, out_ref, d2_ref):
        pj = pl.program_id(1)

        # ---- init running per-ray min squared distance (resident across the P axis) ----
        @pl.when(pj == 0)
        def _():
            d2_ref[...] = jnp.full_like(d2_ref, radius2)

        # ---- raycast over this boundary tile (squared distances, VPU + lane reductions) ----
        bx = bnd_ref[0:1, :]                      # (1, TP)
        by = bnd_ref[1:2, :]                      # (1, TP)
        px = pos_ref[:, 0:1]                      # (TM, 1)
        py = pos_ref[:, 1:2]                      # (TM, 1)
        relx = bx - px                            # (TM, TP)
        rely = by - py                            # (TM, TP)
        dist2 = relx * relx + rely * rely
        in_range = jnp.logical_and(dist2 <= radius2, dist2 > eps2)
        # loop-invariant terms hoisted out of the per-ray loop:
        cand_base = jnp.where(in_range, dist2, radius2)
        thresh = dist2 * ch2                      # dist^2 * cos^2(pi/C)  (>= 0)
        neg_thresh = -thresh

        # Fused validity test: proj >= 0 and proj^2 >= thresh  <=>  proj*|proj| >= thresh
        # (thresh >= 0 always; dist2==0 points are already masked via cand_base).
        # Antipodal pair sharing: dirs[c + C/2] = -dirs[c]  =>  proj flips sign, so the
        # opposite ray's test is  proj*|proj| <= -thresh.
        mins = [None] * num_cells
        if num_cells % 2 == 0:
            half = num_cells // 2
            for p in range(half):                 # C is small -> static unroll
                proj = relx * dirs[p, 0] + rely * dirs[p, 1]
                s = proj * jnp.abs(proj)          # sign-preserving square
                mins[p] = jnp.min(
                    jnp.where(s >= thresh, cand_base, radius2), axis=1, keepdims=True)
                mins[p + half] = jnp.min(
                    jnp.where(s <= neg_thresh, cand_base, radius2), axis=1, keepdims=True)
        else:
            for c in range(num_cells):
                proj = relx * dirs[c, 0] + rely * dirs[c, 1]
                s = proj * jnp.abs(proj)
                mins[c] = jnp.min(
                    jnp.where(s >= thresh, cand_base, radius2), axis=1, keepdims=True)

        # single commit of all C per-ray mins into the resident accumulator
        d2_new = jnp.concatenate(mins, axis=1)    # (TM, C)
        d2_ref[...] = jnp.minimum(d2_ref[...], d2_new)

        # ---- finalize on the last boundary tile: embedding + pre-pool MLP (MXU) ----
        @pl.when(pj == pl.num_programs(1) - 1)
        def _():
            d = jnp.sqrt(d2_ref[...])             # (TM, C) hit distances
            # spatial embedding: ray directions / neighborhood folded into wray in glue
            emb = jnp.dot(d, wray_ref[...], preferred_element_type=jnp.float32) + bs_ref[...]
            # mlp_pre_pool: cat([emb, hidden]) -> Linear -> ReLU -> Linear -> ReLU
            h1 = jnp.dot(emb, w1e_ref[...], preferred_element_type=jnp.float32)
            h1 = h1 + jnp.dot(hid_ref[...], w1h_ref[...], preferred_element_type=jnp.float32)
            h1 = jnp.maximum(h1 + b1_ref[...], 0.0)
            out = jnp.dot(h1, w2_ref[...], preferred_element_type=jnp.float32)
            out_ref[...] = jnp.maximum(out + b2_ref[...], 0.0)

    return kernel


def static_scene_raycast_forward(boundary_xy, curr_end_pos, curr_hidden_1, params,
                                 *, num_cells, neighborhood_size, tm=None, tp=2048,
                                 vmem_limit_bytes=48 * 1024 * 1024):
    """boundary_xy: (2, P); curr_end_pos: (N, 2); curr_hidden_1: (N, H).

    tm: pedestrian tile (multiple of 8). Default (None) picks 128 for large batches and
        auto-shrinks for small N so there are >= 2 "parallel" ped tiles (v7x 2-TC / megacore).
    tp: boundary-point tile (multiple of 128). Default 2048; it is clamped to the
        128-padded scene size so small scenes use a single boundary step. Keep the
        product of the (tm, tp) temporaries well under the VMEM limit (48 MiB default
        covers tm=128, tp=4096 with headroom on v7x's 64 MiB).
    """
    N = curr_end_pos.shape[0]
    P = boundary_xy.shape[1]
    E = params["w_spatial"].shape[0]
    Hh = curr_hidden_1.shape[1]
    H1 = params["w1"].shape[0]
    B = params["w2"].shape[0]
    C = num_cells

    # ---- generation-aware-ish tile selection ----
    P_pad128 = pl.cdiv(P, 128) * 128
    tp = max(128, min((tp // 128) * 128, P_pad128))       # never bigger than the scene
    if tm is None:
        tm = 128
        if N < 2 * tm:                                     # small batch: give both TCs work
            tm = max(8, pl.cdiv(pl.cdiv(N, 2), 8) * 8)
    assert tm % 8 == 0 and tp % 128 == 0

    # ---- pad to tile multiples (no in-kernel remainder handling needed) ----
    N_pad = pl.cdiv(N, tm) * tm
    P_pad = pl.cdiv(P, tp) * tp
    B_pad = pl.cdiv(B, 128) * 128                 # lane-dense output stores

    pos = jnp.pad(curr_end_pos.astype(jnp.float32), ((0, N_pad - N), (0, 0)))
    hid = jnp.pad(curr_hidden_1.astype(jnp.float32), ((0, N_pad - N), (0, 0)))
    # far sentinel so padded boundary points can never land inside the neighborhood
    bnd = jnp.pad(boundary_xy.astype(jnp.float32), ((0, 0), (0, P_pad - P)),
                  constant_values=1e9)

    # ---- glue: deterministic parameter re-arrangement (no compute on activations) ----
    thetas = 2.0 * np.pi * np.arange(C) / C
    dx = jnp.asarray(np.cos(thetas), jnp.float32)             # (C,)
    dy = jnp.asarray(np.sin(thetas), jnp.float32)
    w_s = params["w_spatial"]                                  # (E, 2C) interleaved x,y cols
    wray = (dx[:, None] * w_s[:, 0::2].T
            + dy[:, None] * w_s[:, 1::2].T) / np.float32(neighborhood_size)   # (C, E)
    bs = params["b_spatial"].reshape(1, E)
    w1e = params["w1"][:, :E].T                                # (E, H1)
    w1h = params["w1"][:, E:].T                                # (Hh, H1)
    b1 = params["b1"].reshape(1, H1)
    w2 = jnp.pad(params["w2"].T, ((0, 0), (0, B_pad - B)))     # (H1, B_pad) zero-padded
    b2 = jnp.pad(params["b2"].reshape(1, B), ((0, 0), (0, B_pad - B)))

    kernel = _make_kernel(C, neighborhood_size, tm, E)

    cost = pl.CostEstimate(
        flops=int(N_pad * P_pad * (6 + 4 * C)
                  + 2 * N_pad * (C * E + (E + Hh) * H1 + H1 * B_pad)),
        transcendentals=int(N_pad * C),
        bytes_accessed=int(4 * (N_pad * (2 + Hh + B_pad)
                                + 2 * P_pad * (N_pad // tm)
                                + C * E + E + (E + Hh) * H1 + H1 + H1 * B_pad + B_pad)),
    )

    out = pl.pallas_call(
        kernel,
        out_shape=jax.ShapeDtypeStruct((N_pad, B_pad), jnp.float32),
        grid_spec=pltpu.PrefetchScalarGridSpec(
            num_scalar_prefetch=0,
            grid=(N_pad // tm, P_pad // tp),
            in_specs=[
                pl.BlockSpec((2, tp), lambda i, j: (0, j)),       # boundary tile (planar)
                pl.BlockSpec((tm, 2), lambda i, j: (i, 0)),       # ped positions tile
                pl.BlockSpec((tm, Hh), lambda i, j: (i, 0)),      # hidden tile
                pl.BlockSpec((C, E), lambda i, j: (0, 0)),        # folded spatial weight
                pl.BlockSpec((1, E), lambda i, j: (0, 0)),        # spatial bias
                pl.BlockSpec((E, H1), lambda i, j: (0, 0)),       # W1 (embedding part)
                pl.BlockSpec((Hh, H1), lambda i, j: (0, 0)),      # W1 (hidden part)
                pl.BlockSpec((1, H1), lambda i, j: (0, 0)),
                pl.BlockSpec((H1, B_pad), lambda i, j: (0, 0)),
                pl.BlockSpec((1, B_pad), lambda i, j: (0, 0)),
            ],
            out_specs=pl.BlockSpec((tm, B_pad), lambda i, j: (i, 0)),
            scratch_shapes=[pltpu.VMEM((tm, C), jnp.float32)],    # running min d^2 per ray
        ),
        compiler_params=pltpu.CompilerParams(
            dimension_semantics=("parallel", "arbitrary"),
            vmem_limit_bytes=int(vmem_limit_bytes)),
        cost_estimate=cost,
    )(bnd, pos, hid, wray, bs, w1e, w1h, b1, w2, b2)
    return out[:N, :B]


def reference_forward(boundary_xy, pos, hid, params, *, num_cells, neighborhood_size):
    """Pure-JAX reference mirroring the PyTorch forward (for correctness check)."""
    C = num_cells
    thetas = 2.0 * np.pi * np.arange(C) / C
    u = jnp.asarray(np.stack([np.cos(thetas), np.sin(thetas)], 1), jnp.float32)   # (C, 2)
    bpts = boundary_xy.T                                     # (P, 2)
    rel = bpts[None, :, :] - pos[:, None, :]                 # (N, P, 2)
    dist = jnp.sqrt(jnp.sum(rel * rel, axis=-1))             # (N, P)
    proj = jnp.einsum("npd,cd->ncp", rel, u)                 # (N, C, P)
    cos_half = np.float32(np.cos(np.pi / C))
    valid = ((proj >= dist[:, None, :] * cos_half)
             & (dist[:, None, :] <= neighborhood_size)
             & (dist[:, None, :] > 1e-9))
    cand = jnp.where(valid, dist[:, None, :], np.float32(neighborhood_size))
    d = jnp.min(cand, axis=-1)                               # (N, C)
    grid_pts = pos[:, None, :] + d[:, :, None] * u[None, :, :]          # (N, C, 2)
    rel_norm = (grid_pts - pos[:, None, :]) / neighborhood_size
    feat = rel_norm.reshape(pos.shape[0], 2 * C)             # interleaved (x, y) per cell
    emb = feat @ params["w_spatial"].T + params["b_spatial"]
    h_in = jnp.concatenate([emb, hid], axis=1)
    h1 = jnp.maximum(h_in @ params["w1"].T + params["b1"], 0.0)
    return jnp.maximum(h1 @ params["w2"].T + params["b2"], 0.0)


if __name__ == "__main__":
    # module hyperparameters (small, consistent with the constructor)
    num_cells = 8
    neighborhood_size = 2.0
    embedding_dim = 32
    h_dim = 32
    mlp_dim = 16                     # mlp_pre_pool hidden = mlp_dim * 8 = 128
    bottleneck_dim = 32
    num_ped = 40                     # not a multiple of tm -> exercises remainder padding
    n_boundary_points = 300          # not a multiple of 128 -> exercises sentinel padding

    key = jax.random.PRNGKey(0)
    keys = jax.random.split(key, 10)

    # deterministic synthetic parameters (shapes follow the nn.Linear definitions)
    params = {
        "w_spatial": 0.1 * jax.random.normal(keys[0], (embedding_dim, 2 * num_cells), jnp.float32),
        "b_spatial": 0.1 * jax.random.normal(keys[1], (embedding_dim,), jnp.float32),
        "w1": 0.1 * jax.random.normal(keys[2], (mlp_dim * 8, embedding_dim + h_dim), jnp.float32),
        "b1": 0.1 * jax.random.normal(keys[3], (mlp_dim * 8,), jnp.float32),
        "w2": 0.1 * jax.random.normal(keys[4], (bottleneck_dim, mlp_dim * 8), jnp.float32),
        "b2": 0.1 * jax.random.normal(keys[5], (bottleneck_dim,), jnp.float32),
    }

    # synthetic inputs (scene boundary points + ped states)
    boundary_pts = 3.0 * jax.random.uniform(keys[6], (n_boundary_points, 2), jnp.float32,
                                            minval=-1.0, maxval=1.0)
    boundary_xy = jnp.asarray(boundary_pts.T)                         # (2, P)
    curr_end_pos = jax.random.uniform(keys[7], (num_ped, 2), jnp.float32, minval=-1.0, maxval=1.0)
    curr_hidden_1 = jax.random.normal(keys[8], (num_ped, h_dim), jnp.float32)

    ref = jax.block_until_ready(reference_forward(
        boundary_xy, curr_end_pos, curr_hidden_1, params,
        num_cells=num_cells, neighborhood_size=neighborhood_size))

    # 1) default config: auto tm (small-batch -> multiple ped tiles) + boundary tile
    #    clamped to the scene (single j step, no repeated boundary DMA).
    out = static_scene_raycast_forward(
        boundary_xy, curr_end_pos, curr_hidden_1, params,
        num_cells=num_cells, neighborhood_size=neighborhood_size)
    out = jax.block_until_ready(out)
    assert out.shape == (num_ped, bottleneck_dim)
    np.testing.assert_allclose(np.asarray(out), np.asarray(ref), rtol=1e-2, atol=1e-2)

    # 2) explicit small tiles: exercises the multi-step boundary-tile accumulation path
    #    (init @ j==0, running minimum, finalize @ last j).
    out2 = static_scene_raycast_forward(
        boundary_xy, curr_end_pos, curr_hidden_1, params,
        num_cells=num_cells, neighborhood_size=neighborhood_size, tm=128, tp=128)
    out2 = jax.block_until_ready(out2)
    np.testing.assert_allclose(np.asarray(out2), np.asarray(ref), rtol=1e-2, atol=1e-2)

    print("KERNEL_OK")
</pallas_src>

<mosaic_0001>
module attributes {stable_mosaic.version = 11 : i64} {
  func.func @kernel(%arg0: i32, %arg1: i32, %arg2: memref<2x384xf32, #tpu.memory_space<vmem>>, %arg3: memref<24x2xf32, #tpu.memory_space<vmem>>, %arg4: memref<24x32xf32, #tpu.memory_space<vmem>>, %arg5: memref<8x32xf32, #tpu.memory_space<vmem>>, %arg6: memref<1x32xf32, #tpu.memory_space<vmem>>, %arg7: memref<32x128xf32, #tpu.memory_space<vmem>>, %arg8: memref<32x128xf32, #tpu.memory_space<vmem>>, %arg9: memref<1x128xf32, #tpu.memory_space<vmem>>, %arg10: memref<128x128xf32, #tpu.memory_space<vmem>>, %arg11: memref<1x128xf32, #tpu.memory_space<vmem>>, %arg12: memref<24x128xf32, #tpu.memory_space<vmem>>, %arg13: memref<24x8xf32, #tpu.memory_space<vmem>>) attributes {dimension_semantics = [#tpu.dimension_semantics<parallel>, #tpu.dimension_semantics<arbitrary>], iteration_bounds = array<i64: 2, 1>, scalar_prefetch = 0 : i64, scratch_operands = 1 : i64, tpu.core_type = #tpu.core_type<tc>, window_params = [{transform_indices = @transform_0, window_bounds = array<i64: 2, 384>}, {transform_indices = @transform_1, window_bounds = array<i64: 24, 2>}, {transform_indices = @transform_2, window_bounds = array<i64: 24, 32>}, {pipeline_mode = #tpu.pipeline_mode<synchronous>, transform_indices = @transform_3, window_bounds = array<i64: 8, 32>}, {pipeline_mode = #tpu.pipeline_mode<synchronous>, transform_indices = @transform_4, window_bounds = array<i64: 1, 32>}, {pipeline_mode = #tpu.pipeline_mode<synchronous>, transform_indices = @transform_5, window_bounds = array<i64: 32, 128>}, {pipeline_mode = #tpu.pipeline_mode<synchronous>, transform_indices = @transform_6, window_bounds = array<i64: 32, 128>}, {pipeline_mode = #tpu.pipeline_mode<synchronous>, transform_indices = @transform_7, window_bounds = array<i64: 1, 128>}, {pipeline_mode = #tpu.pipeline_mode<synchronous>, transform_indices = @transform_8, window_bounds = array<i64: 128, 128>}, {pipeline_mode = #tpu.pipeline_mode<synchronous>, transform_indices = @transform_9, window_bounds = array<i64: 1, 128>}, {transform_indices = @transform_10, window_bounds = array<i64: 24, 128>}]} {
    %c0_i32 = arith.constant 0 : i32
    %0 = arith.cmpi eq, %arg1, %c0_i32 : i32
    %1 = arith.extui %0 : i1 to i32
    %c0_i32_0 = arith.constant 0 : i32
    %2 = arith.cmpi ne, %1, %c0_i32_0 : i32
    scf.if %2 {
      %cst_41 = arith.constant 4.000000e+00 : f32
      %102 = vector.broadcast %cst_41 : f32 to vector<24x8xf32>
      %c0_42 = arith.constant 0 : index
      %c0_43 = arith.constant 0 : index
      %103 = vector.load %arg13[%c0_42, %c0_43] : memref<24x8xf32, #tpu.memory_space<vmem>>, vector<24x8xf32>
      tpu.vector_store %arg13[%c0_42, %c0_43], %102 {strides = array<i32>} : memref<24x8xf32, #tpu.memory_space<vmem>>, vector<24x8xf32>,
    } else {
    }
    %c0 = arith.constant 0 : index
    %c0_1 = arith.constant 0 : index
    %3 = vector.load %arg2[%c0, %c0_1] : memref<2x384xf32, #tpu.memory_space<vmem>>, vector<1x384xf32>
    %c1 = arith.constant 1 : index
    %c0_2 = arith.constant 0 : index
    %4 = vector.load %arg2[%c1, %c0_2] : memref<2x384xf32, #tpu.memory_space<vmem>>, vector<1x384xf32>
    %c0_3 = arith.constant 0 : index
    %c0_4 = arith.constant 0 : index
    %5 = vector.load %arg3[%c0_3, %c0_4] : memref<24x2xf32, #tpu.memory_space<vmem>>, vector<24x1xf32>
    %c0_5 = arith.constant 0 : index
    %c1_6 = arith.constant 1 : index
    %6 = vector.load %arg3[%c0_5, %c1_6] : memref<24x2xf32, #tpu.memory_space<vmem>>, vector<24x1xf32>
    %7 = vector.broadcast %3 : vector<1x384xf32> to vector<24x384xf32>
    %8 = vector.broadcast %5 : vector<24x1xf32> to vector<24x384xf32>
    %9 = arith.subf %7, %8 : vector<24x384xf32>
    %10 = vector.broadcast %4 : vector<1x384xf32> to vector<24x384xf32>
    %11 = vector.broadcast %6 : vector<24x1xf32> to vector<24x384xf32>
    %12 = arith.subf %10, %11 : vector<24x384xf32>
    %13 = arith.mulf %9, %9 : vector<24x384xf32>
    %14 = arith.mulf %12, %12 : vector<24x384xf32>
    %15 = arith.addf %13, %14 : vector<24x384xf32>
    %cst = arith.constant 4.000000e+00 : f32
    %16 = vector.broadcast %cst : f32 to vector<24x384xf32>
    %17 = arith.cmpf ole, %15, %16 : vector<24x384xf32>
    %cst_7 = arith.constant 1.000000e-18 : f32
    %18 = vector.broadcast %cst_7 : f32 to vector<24x384xf32>
    %19 = arith.cmpf ogt, %15, %18 : vector<24x384xf32>
    %20 = arith.andi %17, %19 : vector<24x384xi1>
    %cst_8 = arith.constant 4.000000e+00 : f32
    %21 = vector.broadcast %cst_8 : f32 to vector<24x384xf32>
    %22 = arith.select %20, %15, %21 : vector<24x384xi1>, vector<24x384xf32>
    %cst_9 = arith.constant 0.853553414 : f32
    %23 = vector.broadcast %cst_9 : f32 to vector<24x384xf32>
    %24 = arith.mulf %15, %23 : vector<24x384xf32>
    %cst_10 = arith.constant 0.000000e+00 : f32
    %25 = vector.broadcast %cst_10 : f32 to vector<24x384xf32>
    %26 = arith.subf %25, %24 : vector<24x384xf32>
    %cst_11 = arith.constant 1.000000e+00 : f32
    %27 = vector.broadcast %cst_11 : f32 to vector<24x384xf32>
    %28 = arith.mulf %9, %27 : vector<24x384xf32>
    %cst_12 = arith.constant 0.000000e+00 : f32
    %29 = vector.broadcast %cst_12 : f32 to vector<24x384xf32>
    %30 = arith.mulf %12, %29 : vector<24x384xf32>
    %31 = arith.addf %28, %30 : vector<24x384xf32>
    %32 = math.absf %31 : vector<24x384xf32>
    %33 = arith.mulf %31, %32 : vector<24x384xf32>
    %34 = arith.cmpf oge, %33, %24 : vector<24x384xf32>
    %cst_13 = arith.constant 4.000000e+00 : f32
    %35 = vector.broadcast %cst_13 : f32 to vector<24x384xf32>
    %36 = arith.select %34, %22, %35 : vector<24x384xi1>, vector<24x384xf32>
    %cst_14 = arith.constant dense<0x7F800000> : vector<24xf32>
    %37 = vector.multi_reduction <minimumf>, %36, %cst_14 [1] : vector<24x384xf32> to vector<24xf32>
    %38 = vector.shape_cast %37 : vector<24xf32> to vector<24x1xf32>
    %39 = arith.cmpf ole, %33, %26 : vector<24x384xf32>
    %cst_15 = arith.constant 4.000000e+00 : f32
    %40 = vector.broadcast %cst_15 : f32 to vector<24x384xf32>
    %41 = arith.select %39, %22, %40 : vector<24x384xi1>, vector<24x384xf32>
    %cst_16 = arith.constant dense<0x7F800000> : vector<24xf32>
    %42 = vector.multi_reduction <minimumf>, %41, %cst_16 [1] : vector<24x384xf32> to vector<24xf32>
    %43 = vector.shape_cast %42 : vector<24xf32> to vector<24x1xf32>
    %cst_17 = arith.constant 0.707106769 : f32
    %44 = vector.broadcast %cst_17 : f32 to vector<24x384xf32>
    %45 = arith.mulf %9, %44 : vector<24x384xf32>
    %cst_18 = arith.constant 0.707106769 : f32
    %46 = vector.broadcast %cst_18 : f32 to vector<24x384xf32>
    %47 = arith.mulf %12, %46 : vector<24x384xf32>
    %48 = arith.addf %45, %47 : vector<24x384xf32>
    %49 = math.absf %48 : vector<24x384xf32>
    %50 = arith.mulf %48, %49 : vector<24x384xf32>
    %51 = arith.cmpf oge, %50, %24 : vector<24x384xf32>
    %cst_19 = arith.constant 4.000000e+00 : f32
    %52 = vector.broadcast %cst_19 : f32 to vector<24x384xf32>
    %53 = arith.select %51, %22, %52 : vector<24x384xi1>, vector<24x384xf32>
    %cst_20 = arith.constant dense<0x7F800000> : vector<24xf32>
    %54 = vector.multi_reduction <minimumf>, %53, %cst_20 [1] : vector<24x384xf32> to vector<24xf32>
    %55 = vector.shape_cast %54 : vector<24xf32> to vector<24x1xf32>
    %56 = arith.cmpf ole, %50, %26 : vector<24x384xf32>
    %cst_21 = arith.constant 4.000000e+00 : f32
    %57 = vector.broadcast %cst_21 : f32 to vector<24x384xf32>
    %58 = arith.select %56, %22, %57 : vector<24x384xi1>, vector<24x384xf32>
    %cst_22 = arith.constant dense<0x7F800000> : vector<24xf32>
    %59 = vector.multi_reduction <minimumf>, %58, %cst_22 [1] : vector<24x384xf32> to vector<24xf32>
    %60 = vector.shape_cast %59 : vector<24xf32> to vector<24x1xf32>
    %cst_23 = arith.constant 6.12323426E-17 : f32
    %61 = vector.broadcast %cst_23 : f32 to vector<24x384xf32>
    %62 = arith.mulf %9, %61 : vector<24x384xf32>
    %cst_24 = arith.constant 1.000000e+00 : f32
    %63 = vector.broadcast %cst_24 : f32 to vector<24x384xf32>
    %64 = arith.mulf %12, %63 : vector<24x384xf32>
    %65 = arith.addf %62, %64 : vector<24x384xf32>
    %66 = math.absf %65 : vector<24x384xf32>
    %67 = arith.mulf %65, %66 : vector<24x384xf32>
    %68 = arith.cmpf oge, %67, %24 : vector<24x384xf32>
    %cst_25 = arith.constant 4.000000e+00 : f32
    %69 = vector.broadcast %cst_25 : f32 to vector<24x384xf32>
    %70 = arith.select %68, %22, %69 : vector<24x384xi1>, vector<24x384xf32>
    %cst_26 = arith.constant dense<0x7F800000> : vector<24xf32>
    %71 = vector.multi_reduction <minimumf>, %70, %cst_26 [1] : vector<24x384xf32> to vector<24xf32>
    %72 = vector.shape_cast %71 : vector<24xf32> to vector<24x1xf32>
    %73 = arith.cmpf ole, %67, %26 : vector<24x384xf32>
    %cst_27 = arith.constant 4.000000e+00 : f32
    %74 = vector.broadcast %cst_27 : f32 to vector<24x384xf32>
    %75 = arith.select %73, %22, %74 : vector<24x384xi1>, vector<24x384xf32>
    %cst_28 = arith.constant dense<0x7F800000> : vector<24xf32>
    %76 = vector.multi_reduction <minimumf>, %75, %cst_28 [1] : vector<24x384xf32> to vector<24xf32>
    %77 = vector.shape_cast %76 : vector<24xf32> to vector<24x1xf32>
    %cst_29 = arith.constant -0.707106769 : f32
    %78 = vector.broadcast %cst_29 : f32 to vector<24x384xf32>
    %79 = arith.mulf %9, %78 : vector<24x384xf32>
    %cst_30 = arith.constant 0.707106769 : f32
    %80 = vector.broadcast %cst_30 : f32 to vector<24x384xf32>
    %81 = arith.mulf %12, %80 : vector<24x384xf32>
    %82 = arith.addf %79, %81 : vector<24x384xf32>
    %83 = math.absf %82 : vector<24x384xf32>
    %84 = arith.mulf %82, %83 : vector<24x384xf32>
    %85 = arith.cmpf oge, %84, %24 : vector<24x384xf32>
    %cst_31 = arith.constant 4.000000e+00 : f32
    %86 = vector.broadcast %cst_31 : f32 to vector<24x384xf32>
    %87 = arith.select %85, %22, %86 : vector<24x384xi1>, vector<24x384xf32>
    %cst_32 = arith.constant dense<0x7F800000> : vector<24xf32>
    %88 = vector.multi_reduction <minimumf>, %87, %cst_32 [1] : vector<24x384xf32> to vector<24xf32>
    %89 = vector.shape_cast %88 : vector<24xf32> to vector<24x1xf32>
    %90 = arith.cmpf ole, %84, %26 : vector<24x384xf32>
    %cst_33 = arith.constant 4.000000e+00 : f32
    %91 = vector.broadcast %cst_33 : f32 to vector<24x384xf32>
    %92 = arith.select %90, %22, %91 : vector<24x384xi1>, vector<24x384xf32>
    %cst_34 = arith.constant dense<0x7F800000> : vector<24xf32>
    %93 = vector.multi_reduction <minimumf>, %92, %cst_34 [1] : vector<24x384xf32> to vector<24xf32>
    %94 = vector.shape_cast %93 : vector<24xf32> to vector<24x1xf32>
    %95 = tpu.concatenate %38, %55, %72, %89, %43, %60, %77, %94 in 1 : vector<24x1xf32>, vector<24x1xf32>, vector<24x1xf32>, vector<24x1xf32>, vector<24x1xf32>, vector<24x1xf32>, vector<24x1xf32>, vector<24x1xf32> -> vector<24x8xf32>
    %c0_35 = arith.constant 0 : index
    %c0_36 = arith.constant 0 : index
    %96 = vector.load %arg13[%c0_35, %c0_36] : memref<24x8xf32, #tpu.memory_space<vmem>>, vector<24x8xf32>
    %97 = arith.minimumf %96, %95 : vector<24x8xf32>
    %c0_37 = arith.constant 0 : index
    %c0_38 = arith.constant 0 : index
    %98 = vector.load %arg13[%c0_37, %c0_38] : memref<24x8xf32, #tpu.memory_space<vmem>>, vector<24x8xf32>
    tpu.vector_store %arg13[%c0_37, %c0_38], %97 {strides = array<i32>} : memref<24x8xf32, #tpu.memory_space<vmem>>, vector<24x8xf32>,
    %c0_i32_39 = arith.constant 0 : i32
    %99 = arith.cmpi eq, %arg1, %c0_i32_39 : i32
    %100 = arith.extui %99 : i1 to i32
    %c0_i32_40 = arith.constant 0 : i32
    %101 = arith.cmpi ne, %100, %c0_i32_40 : i32
    scf.if %101 {
      %c0_41 = arith.constant 0 : index
      %c0_42 = arith.constant 0 : index
      %102 = vector.load %arg13[%c0_41, %c0_42] : memref<24x8xf32, #tpu.memory_space<vmem>>, vector<24x8xf32>
      %103 = math.sqrt %102 : vector<24x8xf32>
      %c0_43 = arith.constant 0 : index
      %c0_44 = arith.constant 0 : index
      %104 = vector.load %arg5[%c0_43, %c0_44] : memref<8x32xf32, #tpu.memory_space<vmem>>, vector<8x32xf32>
      %cst_45 = arith.constant dense<0.000000e+00> : vector<24x32xf32>
      %105 = tpu.matmul %103, %104, %cst_45 {dimension_numbers = #tpu.dot_dimension_numbers<[1], [0], [0], [1], [0, 0, 1, 1], [], []>} : vector<24x8xf32>, vector<8x32xf32>, vector<24x32xf32> -> vector<24x32xf32>
      %c0_46 = arith.constant 0 : index
      %c0_47 = arith.constant 0 : index
      %106 = vector.load %arg6[%c0_46, %c0_47] : memref<1x32xf32, #tpu.memory_space<vmem>>, vector<1x32xf32>
      %107 = vector.broadcast %106 : vector<1x32xf32> to vector<24x32xf32>
      %108 = arith.addf %105, %107 : vector<24x32xf32>
      %c0_48 = arith.constant 0 : index
      %c0_49 = arith.constant 0 : index
      %109 = vector.load %arg7[%c0_48, %c0_49] : memref<32x128xf32, #tpu.memory_space<vmem>>, vector<32x128xf32>
      %cst_50 = arith.constant dense<0.000000e+00> : vector<24x128xf32>
      %110 = tpu.matmul %108, %109, %cst_50 {dimension_numbers = #tpu.dot_dimension_numbers<[1], [0], [0], [1], [0, 0, 1, 1], [], []>} : vector<24x32xf32>, vector<32x128xf32>, vector<24x128xf32> -> vector<24x128xf32>
      %c0_51 = arith.constant 0 : index
      %c0_52 = arith.constant 0 : index
      %111 = vector.load %arg4[%c0_51, %c0_52] : memref<24x32xf32, #tpu.memory_space<vmem>>, vector<24x32xf32>
      %c0_53 = arith.constant 0 : index
      %c0_54 = arith.constant 0 : index
      %112 = vector.load %arg8[%c0_53, %c0_54] : memref<32x128xf32, #tpu.memory_space<vmem>>, vector<32x128xf32>
      %cst_55 = arith.constant dense<0.000000e+00> : vector<24x128xf32>
      %113 = tpu.matmul %111, %112, %cst_55 {dimension_numbers = #tpu.dot_dimension_numbers<[1], [0], [0], [1], [0, 0, 1, 1], [], []>} : vector<24x32xf32>, vector<32x128xf32>, vector<24x128xf32> -> vector<24x128xf32>
      %114 = arith.addf %110, %113 : vector<24x128xf32>
      %c0_56 = arith.constant 0 : index
      %c0_57 = arith.constant 0 : index
      %115 = vector.load %arg9[%c0_56, %c0_57] : memref<1x128xf32, #tpu.memory_space<vmem>>, vector<1x128xf32>
      %116 = vector.broadcast %115 : vector<1x128xf32> to vector<24x128xf32>
      %117 = arith.addf %114, %116 : vector<24x128xf32>
      %cst_58 = arith.constant 0.000000e+00 : f32
      %118 = vector.broadcast %cst_58 : f32 to vector<24x128xf32>
      %119 = arith.maximumf %117, %118 : vector<24x128xf32>
      %c0_59 = arith.constant 0 : index
      %c0_60 = arith.constant 0 : index
      %120 = vector.load %arg10[%c0_59, %c0_60] : memref<128x128xf32, #tpu.memory_space<vmem>>, vector<128x128xf32>
      %cst_61 = arith.constant dense<0.000000e+00> : vector<24x128xf32>
      %121 = tpu.matmul %119, %120, %cst_61 {dimension_numbers = #tpu.dot_dimension_numbers<[1], [0], [0], [1], [0, 0, 1, 1], [], []>} : vector<24x128xf32>, vector<128x128xf32>, vector<24x128xf32> -> vector<24x128xf32>
      %c0_62 = arith.constant 0 : index
      %c0_63 = arith.constant 0 : index
      %122 = vector.load %arg11[%c0_62, %c0_63] : memref<1x128xf32, #tpu.memory_space<vmem>>, vector<1x128xf32>
      %123 = vector.broadcast %122 : vector<1x128xf32> to vector<24x128xf32>
      %124 = arith.addf %121, %123 : vector<24x128xf32>
      %cst_64 = arith.constant 0.000000e+00 : f32
      %125 = vector.broadcast %cst_64 : f32 to vector<24x128xf32>
      %126 = arith.maximumf %124, %125 : vector<24x128xf32>
      %c0_65 = arith.constant 0 : index
      %c0_66 = arith.constant 0 : index
      %127 = vector.load %arg12[%c0_65, %c0_66] : memref<24x128xf32, #tpu.memory_space<vmem>>, vector<24x128xf32>
      tpu.vector_store %arg12[%c0_65, %c0_66], %126 {strides = array<i32>} : memref<24x128xf32, #tpu.memory_space<vmem>>, vector<24x128xf32>,
    } else {
    }
    return
  }
  func.func @transform_0(%arg0: i32, %arg1: i32) -> (i32, i32) {
    %c0_i32 = arith.constant 0 : i32
    %c0_i32_0 = arith.constant 0 : i32
    return %c0_i32, %arg1 : i32, i32
  }
  func.func @transform_1(%arg0: i32, %arg1: i32) -> (i32, i32) {
    %c0_i32 = arith.constant 0 : i32
    %c0_i32_0 = arith.constant 0 : i32
    return %arg0, %c0_i32 : i32, i32
  }
  func.func @transform_2(%arg0: i32, %arg1: i32) -> (i32, i32) {
    %c0_i32 = arith.constant 0 : i32
    %c0_i32_0 = arith.constant 0 : i32
    return %arg0, %c0_i32 : i32, i32
  }
  func.func @transform_3(%arg0: i32, %arg1: i32) -> (i32, i32) {
    %c0_i32 = arith.constant 0 : i32
    %c0_i32_0 = arith.constant 0 : i32
    %c0_i32_1 = arith.constant 0 : i32
    return %c0_i32, %c0_i32_0 : i32, i32
  }
  func.func @transform_4(%arg0: i32, %arg1: i32) -> (i32, i32) {
    %c0_i32 = arith.constant 0 : i32
    %c0_i32_0 = arith.constant 0 : i32
    %c0_i32_1 = arith.constant 0 : i32
    return %c0_i32, %c0_i32_0 : i32, i32
  }
  func.func @transform_5(%arg0: i32, %arg1: i32) -> (i32, i32) {
    %c0_i32 = arith.constant 0 : i32
    %c0_i32_0 = arith.constant 0 : i32
    %c0_i32_1 = arith.constant 0 : i32
    return %c0_i32, %c0_i32_0 : i32, i32
  }
  func.func @transform_6(%arg0: i32, %arg1: i32) -> (i32, i32) {
    %c0_i32 = arith.constant 0 : i32
    %c0_i32_0 = arith.constant 0 : i32
    %c0_i32_1 = arith.constant 0 : i32
    return %c0_i32, %c0_i32_0 : i32, i32
  }
  func.func @transform_7(%arg0: i32, %arg1: i32) -> (i32, i32) {
    %c0_i32 = arith.constant 0 : i32
    %c0_i32_0 = arith.constant 0 : i32
    %c0_i32_1 = arith.constant 0 : i32
    return %c0_i32, %c0_i32_0 : i32, i32
  }
  func.func @transform_8(%arg0: i32, %arg1: i32) -> (i32, i32) {
    %c0_i32 = arith.constant 0 : i32
    %c0_i32_0 = arith.constant 0 : i32
    %c0_i32_1 = arith.constant 0 : i32
    return %c0_i32, %c0_i32_0 : i32, i32
  }
  func.func @transform_9(%arg0: i32, %arg1: i32) -> (i32, i32) {
    %c0_i32 = arith.constant 0 : i32
    %c0_i32_0 = arith.constant 0 : i32
    %c0_i32_1 = arith.constant 0 : i32
    return %c0_i32, %c0_i32_0 : i32, i32
  }
  func.func @transform_10(%arg0: i32, %arg1: i32) -> (i32, i32) {
    %c0_i32 = arith.constant 0 : i32
    %c0_i32_0 = arith.constant 0 : i32
    return %arg0, %c0_i32 : i32, i32
  }
}

</mosaic_0001>

<llo_original>
// kernel: tpu_custom_call.1
$region0: #{tpu_custom_call.1}
  #allocation0 [shape = 'u32[]', space=smem, size = 0x4, offset = 0x4, fixed_abs, tag = 'smem constant byte address 0x4 - core index']
  #allocation1 [shape = 'u32[144,128]{1,0:T(1,128)}', space=vmem, size = 0x12000, scoped, tag = 'internal scratch']
  #allocation2 [shape = 'f32[24,8]{1,0:T(8,128)}', space=vmem, size = 0x3000, scoped, tag = 'scratch operand']
  %s0 = inlined_call_operand.hbm [shape: f32[2,384], index: 0, kind: input, shape index: {}]
  %s1 = inlined_call_operand.vmem [shape: f32[48,2], index: 1, kind: input, shape index: {}]
  %s2 = inlined_call_operand.vmem [shape: f32[48,32], index: 2, kind: input, shape index: {}]
  %s3 = inlined_call_operand.hbm [shape: f32[8,32], index: 3, kind: input, shape index: {}]
  %s4 = inlined_call_operand.hbm [shape: f32[1,32], index: 4, kind: input, shape index: {}]
  %s5 = inlined_call_operand.vmem [shape: f32[32,128], index: 5, kind: input, shape index: {}]
  %s6 = inlined_call_operand.hbm [shape: f32[32,128], index: 6, kind: input, shape index: {}]
  %s7 = inlined_call_operand.hbm [shape: f32[1,128], index: 7, kind: input, shape index: {}]
  %s8 = inlined_call_operand.vmem [shape: f32[128,128], index: 8, kind: input, shape index: {}]
  %s9 = inlined_call_operand.vmem [shape: f32[1,128], index: 9, kind: input, shape index: {}]
  %s10 = inlined_call_operand.hbm [shape: f32[48,128], index: 10, kind: output, shape index: {}]
  %s11 = sld [smem:[#allocation0]]
  $region101: #{tpu_custom_call.1} parent=0
    _
  %s13 = ssub.s32 1, %s11
  %s14 = scalar_select 0, %s13, %s11
  $region1: #{tpu_custom_call.1} parent=0
    #allocation3 [shape = 'u8[3072]{0}', space=vmem, size = 0xc00, scoped, tag = 'input window, operand 0, single buffered']
    #allocation4 [shape = 's32[2]{0}', space=sflag, size = 0x8, scoped, tag = 'scoped memory for tpu_custom_call.1']
    #allocation5 [shape = 's32[2]{0}', space=sflag, size = 0x8, scoped, tag = 'scoped memory for tpu_custom_call.1']
    #allocation6 [shape = 'u8[4096]{0}', space=vmem, size = 0x1000, scoped, tag = 'input window, operand 3, single buffered']
    #allocation7 [shape = 's32[1]{0}', space=sflag, size = 0x4, scoped, tag = 'scoped memory for tpu_custom_call.1']
    #allocation8 [shape = 'u8[512]{0}', space=vmem, size = 0x400, scoped, tag = 'input window, operand 4, single buffered']
    #allocation9 [shape = 'u8[16384]{0}', space=vmem, size = 0x4000, scoped, tag = 'input window, operand 6, single buffered']
    #allocation10 [shape = 's32[1]{0}', space=sflag, size = 0x4, scoped, tag = 'scoped memory for tpu_custom_call.1']
    #allocation11 [shape = 'u8[512]{0}', space=vmem, size = 0x400, scoped, tag = 'input window, operand 7, single buffered']
    #allocation12 [shape = 'u8[24576]{0}', space=vmem, size = 0x6000, scoped, tag = 'output window, operand 0']
    %15 = vsyncpa [#allocation4], 0
    %16 = vsyncpa [#allocation7], 0
    %17 = vsyncpa [#allocation10], 0
    %18 = vsyncpa [#allocation5], 0
    %s19 = scalar_lea.sflag [#allocation5], 1
    %20 = vsyncpa %s19, 0
    loop: start=0, step=1, limit=4
    $region2: #{tpu_custom_call.1} parent=1 // loop_pre_header
      _
    $region3: #{tpu_custom_call.1} parent=1 // loop_header
      %s22 = sphi 0, %s26
      %p23 = scmp.ge.s32.totalorder %s22, 4
      %s29 = sphi 0, %s41
      %s30 = sphi 0, %s37
      %s31 = sphi 0, %s29
      %s32 = sphi 0, %s30
      %s33 = sphi 0, %s31
      %s34 = sphi 0, %s32
      %s44 = sphi 0, %s46
      %s47 = sphi 0, %s44
      %s48 = sphi 0, %s47
      %s64 = sphi 0, %s48
      %s70 = sphi 0, %s72
      %s73 = sphi 0, %s70
      %s74 = sphi 0, %s73
      %s90 = sphi 0, %s74
      %s96 = sphi 0, %s98
      %s99 = sphi 0, %s96
      %s100 = sphi 0, %s99
      %s116 = sphi 0, %s100
      %s120 = sphi 0, %s120
      %s122 = sphi 0, %s120
      %s123 = sphi 0, %s122
      %s137 = sphi 0, %s123
      %s141 = sphi 0, %s141
      %s143 = sphi 0, %s141
      %s144 = sphi 0, %s143
      %s158 = sphi 0, %s144
      %s162 = sphi 0, %s162
      %s164 = sphi 0, %s162
      %s165 = sphi 0, %s164
      %s179 = sphi 0, %s165
      %s183 = sphi 0, %s183
      %s185 = sphi 0, %s183
      %s186 = sphi 0, %s185
      %s200 = sphi 0, %s186
      %s204 = sphi 0, %s204
      %s206 = sphi 0, %s204
      %s207 = sphi 0, %s206
      %s221 = sphi 0, %s207
      %s225 = sphi 0, %s225
      %s227 = sphi 0, %s225
      %s228 = sphi 0, %s227
      %s242 = sphi 0, %s228
      %s246 = sphi 0, %s246
      %s248 = sphi 0, %s246
      %s249 = sphi 0, %s248
      %s263 = sphi 0, %s249
      %s269 = sphi 0, %s271
      %s272 = sphi 0, %s269
      %s273 = sphi 0, %s272
      %s289 = sphi 0, %s273
    $region4: #{tpu_custom_call.1} parent=1 // loop_header_branch
      %25 = sbr.rel (%p23) target = $region8
    $region5: #{tpu_custom_call.1} parent=1 // loop_body
      %s27 = ssub.s32 %s22, 1
      %s28 = ssub.s32 %s22, 2
      %s35 = sadd.s32 1, %s30
      %p36 = scmp.ge.s32.totalorder %s35, 1
      %s37 = scalar_select %p36, 0, %s35
      %s38 = sadd.s32 1, %s29
      %s39 = scalar_select %p36, %s38, %s29
      %p40 = scmp.ge.s32.totalorder %s39, 2
      %s41 = scalar_select %p40, 0, %s39
      %s42 = ssub.s32 %s30, %s37
      %p43 = scmp.eq.s32.totalorder %s42, 0
      %s45 = sadd.s32 %s44, 1
      %s46 = scalar_select %p43, %s44, %s45
      %p49 = pneg %p43
      %p50 = scmp.eq.s32.totalorder %s22, 1
      %p51 = por %p49, %p50
      %p52 = scmp.ne.s32.totalorder %s44, %s47
      %p53 = scmp.eq.s32.totalorder %s22, 0
      %p54 = por %p52, %p53
      %p55 = scmp.ne.s32.totalorder %s44, %s47
      %p56 = scmp.eq.s32.totalorder %s27, 1
      %p57 = por %p55, %p56
      %p58 = scmp.ne.s32.totalorder %s47, %s48
      %p59 = scmp.eq.s32.totalorder %s27, 0
      %p60 = por %p58, %p59
      %p61 = scmp.ne.s32.totalorder %s47, %s48
      %p62 = scmp.eq.s32.totalorder %s28, 1
      %p63 = por %p61, %p62
      %p65 = scmp.ne.s32.totalorder %s48, %s64
      %p66 = scmp.eq.s32.totalorder %s28, 0
      %p67 = por %p65, %p66
      %s68 = ssub.s32 %s29, %s41
      %p69 = scmp.eq.s32.totalorder %s68, 0
      %s71 = sadd.s32 %s70, 1
      %s72 = scalar_select %p69, %s70, %s71
      %p75 = pneg %p69
      %p76 = scmp.eq.s32.totalorder %s22, 1
      %p77 = por %p75, %p76
      %p78 = scmp.ne.s32.totalorder %s70, %s73
      %p79 = scmp.eq.s32.totalorder %s22, 0
      %p80 = por %p78, %p79
      %p81 = scmp.ne.s32.totalorder %s70, %s73
      %p82 = scmp.eq.s32.totalorder %s27, 1
      %p83 = por %p81, %p82
      %p84 = scmp.ne.s32.totalorder %s73, %s74
      %p85 = scmp.eq.s32.totalorder %s27, 0
      %p86 = por %p84, %p85
      %p87 = scmp.ne.s32.totalorder %s73, %s74
      %p88 = scmp.eq.s32.totalorder %s28, 1
      %p89 = por %p87, %p88
      %p91 = scmp.ne.s32.totalorder %s74, %s90
      %p92 = scmp.eq.s32.totalorder %s28, 0
      %p93 = por %p91, %p92
      %s94 = ssub.s32 %s29, %s41
      %p95 = scmp.eq.s32.totalorder %s94, 0
      %s97 = sadd.s32 %s96, 1
      %s98 = scalar_select %p95, %s96, %s97
      %p101 = pneg %p95
      %p102 = scmp.eq.s32.totalorder %s22, 1
      %p103 = por %p101, %p102
      %p104 = scmp.ne.s32.totalorder %s96, %s99
      %p105 = scmp.eq.s32.totalorder %s22, 0
      %p106 = por %p104, %p105
      %p107 = scmp.ne.s32.totalorder %s96, %s99
      %p108 = scmp.eq.s32.totalorder %s27, 1
      %p109 = por %p107, %p108
      %p110 = scmp.ne.s32.totalorder %s99, %s100
      %p111 = scmp.eq.s32.totalorder %s27, 0
      %p112 = por %p110, %p111
      %p113 = scmp.ne.s32.totalorder %s99, %s100
      %p114 = scmp.eq.s32.totalorder %s28, 1
      %p115 = por %p113, %p114
      %p117 = scmp.ne.s32.totalorder %s100, %s116
      %p118 = scmp.eq.s32.totalorder %s28, 0
      %p119 = por %p117, %p118
      %s121 = sadd.s32 %s120, 1
      %p124 = scmp.eq.s32.totalorder %s22, 1
      %p125 = scmp.ne.s32.totalorder %s120, %s122
      %p126 = scmp.eq.s32.totalorder %s22, 0
      %p127 = por %p125, %p126
      %p128 = scmp.ne.s32.totalorder %s120, %s122
      %p129 = scmp.eq.s32.totalorder %s27, 1
      %p130 = por %p128, %p129
      %p131 = scmp.ne.s32.totalorder %s122, %s123
      %p132 = scmp.eq.s32.totalorder %s27, 0
      %p133 = por %p131, %p132
      %p134 = scmp.ne.s32.totalorder %s122, %s123
      %p135 = scmp.eq.s32.totalorder %s28, 1
      %p136 = por %p134, %p135
      %p138 = scmp.ne.s32.totalorder %s123, %s137
      %p139 = scmp.eq.s32.totalorder %s28, 0
      %p140 = por %p138, %p139
      %s142 = sadd.s32 %s141, 1
      %p145 = scmp.eq.s32.totalorder %s22, 1
      %p146 = scmp.ne.s32.totalorder %s141, %s143
      %p147 = scmp.eq.s32.totalorder %s22, 0
      %p148 = por %p146, %p147
      %p149 = scmp.ne.s32.totalorder %s141, %s143
      %p150 = scmp.eq.s32.totalorder %s27, 1
      %p151 = por %p149, %p150
      %p152 = scmp.ne.s32.totalorder %s143, %s144
      %p153 = scmp.eq.s32.totalorder %s27, 0
      %p154 = por %p152, %p153
      %p155 = scmp.ne.s32.totalorder %s143, %s144
      %p156 = scmp.eq.s32.totalorder %s28, 1
      %p157 = por %p155, %p156
      %p159 = scmp.ne.s32.totalorder %s144, %s158
      %p160 = scmp.eq.s32.totalorder %s28, 0
      %p161 = por %p159, %p160
      %s163 = sadd.s32 %s162, 1
      %p166 = scmp.eq.s32.totalorder %s22, 1
      %p167 = scmp.ne.s32.totalorder %s162, %s164
      %p168 = scmp.eq.s32.totalorder %s22, 0
      %p169 = por %p167, %p168
      %p170 = scmp.ne.s32.totalorder %s162, %s164
      %p171 = scmp.eq.s32.totalorder %s27, 1
      %p172 = por %p170, %p171
      %p173 = scmp.ne.s32.totalorder %s164, %s165
      %p174 = scmp.eq.s32.totalorder %s27, 0
      %p175 = por %p173, %p174
      %p176 = scmp.ne.s32.totalorder %s164, %s165
      %p177 = scmp.eq.s32.totalorder %s28, 1
      %p178 = por %p176, %p177
      %p180 = scmp.ne.s32.totalorder %s165, %s179
      %p181 = scmp.eq.s32.totalorder %s28, 0
      %p182 = por %p180, %p181
      %s184 = sadd.s32 %s183, 1
      %p187 = scmp.eq.s32.totalorder %s22, 1
      %p188 = scmp.ne.s32.totalorder %s183, %s185
      %p189 = scmp.eq.s32.totalorder %s22, 0
      %p190 = por %p188, %p189
      %p191 = scmp.ne.s32.totalorder %s183, %s185
      %p192 = scmp.eq.s32.totalorder %s27, 1
      %p193 = por %p191, %p192
      %p194 = scmp.ne.s32.totalorder %s185, %s186
      %p195 = scmp.eq.s32.totalorder %s27, 0
      %p196 = por %p194, %p195
      %p197 = scmp.ne.s32.totalorder %s185, %s186
      %p198 = scmp.eq.s32.totalorder %s28, 1
      %p199 = por %p197, %p198
      %p201 = scmp.ne.s32.totalorder %s186, %s200
      %p202 = scmp.eq.s32.totalorder %s28, 0
      %p203 = por %p201, %p202
      %s205 = sadd.s32 %s204, 1
      %p208 = scmp.eq.s32.totalorder %s22, 1
      %p209 = scmp.ne.s32.totalorder %s204, %s206
      %p210 = scmp.eq.s32.totalorder %s22, 0
      %p211 = por %p209, %p210
      %p212 = scmp.ne.s32.totalorder %s204, %s206
      %p213 = scmp.eq.s32.totalorder %s27, 1
      %p214 = por %p212, %p213
      %p215 = scmp.ne.s32.totalorder %s206, %s207
      %p216 = scmp.eq.s32.totalorder %s27, 0
      %p217 = por %p215, %p216
      %p218 = scmp.ne.s32.totalorder %s206, %s207
      %p219 = scmp.eq.s32.totalorder %s28, 1
      %p220 = por %p218, %p219
      %p222 = scmp.ne.s32.totalorder %s207, %s221
      %p223 = scmp.eq.s32.totalorder %s28, 0
      %p224 = por %p222, %p223
      %s226 = sadd.s32 %s225, 1
      %p229 = scmp.eq.s32.totalorder %s22, 1
      %p230 = scmp.ne.s32.totalorder %s225, %s227
      %p231 = scmp.eq.s32.totalorder %s22, 0
      %p232 = por %p230, %p231
      %p233 = scmp.ne.s32.totalorder %s225, %s227
      %p234 = scmp.eq.s32.totalorder %s27, 1
      %p235 = por %p233, %p234
      %p236 = scmp.ne.s32.totalorder %s227, %s228
      %p237 = scmp.eq.s32.totalorder %s27, 0
      %p238 = por %p236, %p237
      %p239 = scmp.ne.s32.totalorder %s227, %s228
      %p240 = scmp.eq.s32.totalorder %s28, 1
      %p241 = por %p239, %p240
      %p243 = scmp.ne.s32.totalorder %s228, %s242
      %p244 = scmp.eq.s32.totalorder %s28, 0
      %p245 = por %p243, %p244
      %s247 = sadd.s32 %s246, 1
      %p250 = scmp.eq.s32.totalorder %s22, 1
      %p251 = scmp.ne.s32.totalorder %s246, %s248
      %p252 = scmp.eq.s32.totalorder %s22, 0
      %p253 = por %p251, %p252
      %p254 = scmp.ne.s32.totalorder %s246, %s248
      %p255 = scmp.eq.s32.totalorder %s27, 1
      %p256 = por %p254, %p255
      %p257 = scmp.ne.s32.totalorder %s248, %s249
      %p258 = scmp.eq.s32.totalorder %s27, 0
      %p259 = por %p257, %p258
      %p260 = scmp.ne.s32.totalorder %s248, %s249
      %p261 = scmp.eq.s32.totalorder %s28, 1
      %p262 = por %p260, %p261
      %p264 = scmp.ne.s32.totalorder %s249, %s263
      %p265 = scmp.eq.s32.totalorder %s28, 0
      %p266 = por %p264, %p265
      %s267 = ssub.s32 %s29, %s41
      %p268 = scmp.eq.s32.totalorder %s267, 0
      %s270 = sadd.s32 %s269, 1
      %s271 = scalar_select %p268, %s269, %s270
      %p274 = pneg %p268
      %p275 = scmp.eq.s32.totalorder %s22, 1
      %p276 = por %p274, %p275
      %p277 = scmp.ne.s32.totalorder %s269, %s272
      %p278 = scmp.eq.s32.totalorder %s22, 0
      %p279 = por %p277, %p278
      %p280 = scmp.ne.s32.totalorder %s269, %s272
      %p281 = scmp.eq.s32.totalorder %s27, 1
      %p282 = por %p280, %p281
      %p283 = scmp.ne.s32.totalorder %s272, %s273
      %p284 = scmp.eq.s32.totalorder %s27, 0
      %p285 = por %p283, %p284
      %p286 = scmp.ne.s32.totalorder %s272, %s273
      %p287 = scmp.eq.s32.totalorder %s28, 1
      %p288 = por %p286, %p287
      %p290 = scmp.ne.s32.totalorder %s273, %s289
      %p291 = scmp.eq.s32.totalorder %s28, 0
      %p292 = por %p290, %p291
      %p293 = scmp.le.s32.totalorder 1, %s22
      %p294 = scmp.lt.s32.totalorder %s22, 3
      %p295 = pnand %p293, %p294
      %p296 = pneg %p295
      // Predicated region
      $region9: #{tpu_custom_call.1} parent=5 // pred_check
        _
      $region10: #{tpu_custom_call.1} parent=5 // pred_check_branch
        %298 = sbr.rel (%p295) target = $region12
      $region11: #{tpu_custom_call.1} parent=5 // pred_region
        %s299 = ssub.s32 %s22, 1
        // Predicated region
        $region13: #{tpu_custom_call.1} parent=11 // pred_check
          %p300 = pneg %p60
        $region14: #{tpu_custom_call.1} parent=11 // pred_check_branch
          %302 = sbr.rel (%p300) target = $region16
        $region15: #{tpu_custom_call.1} parent=11 // pred_region
          %s303 = smul.u32 3, %s32
          %s305 = ssub.s32 96, 96
          %306 = vsyncadd [#allocation4], %s305
          %s307 = smul.addr %s303, 32
          %s308 = scalar_lea.hbm %s0, %s307
          %s310 = sshll.u32 [#allocation3], 4
          %s311 = int_to_ptr.vmem [resolvable:$true] %s310
          %313 = dma.hbm_to_vmem [thread:$0]  %s308, 96, %s311, [#allocation4]
        $region16: #{tpu_custom_call.1} parent=11 // pred_fallthru
          _
        // Predicated region
        $region17: #{tpu_custom_call.1} parent=11 // pred_check
          %p314 = pneg %p133
        $region18: #{tpu_custom_call.1} parent=11 // pred_check_branch
          %316 = sbr.rel (%p314) target = $region20
        $region19: #{tpu_custom_call.1} parent=11 // pred_region
          %s318 = ssub.s32 128, 128
          %319 = vsyncadd [#allocation7], %s318
          %s321 = sshll.u32 [#allocation6], 4
          %s322 = int_to_ptr.vmem [resolvable:$true] %s321
          %324 = dma.hbm_to_vmem [thread:$0]  %s3, 128, %s322, [#allocation7]
        $region20: #{tpu_custom_call.1} parent=11 // pred_fallthru
          _
        // Predicated region
        $region21: #{tpu_custom_call.1} parent=11 // pred_check
          %p325 = pneg %p154
        $region22: #{tpu_custom_call.1} parent=11 // pred_check_branch
          %327 = sbr.rel (%p325) target = $region24
        $region23: #{tpu_custom_call.1} parent=11 // pred_region
          %s329 = ssub.s32 16, 16
          %330 = vsyncadd [#allocation7], %s329
          %s332 = sshll.u32 [#allocation8], 4
          %s333 = int_to_ptr.vmem [resolvable:$true] %s332
          %335 = dma.hbm_to_vmem [thread:$0]  %s4, 16, %s333, [#allocation7]
        $region24: #{tpu_custom_call.1} parent=11 // pred_fallthru
          _
        // Predicated region
        $region25: #{tpu_custom_call.1} parent=11 // pred_check
          %p336 = pneg %p175
        $region26: #{tpu_custom_call.1} parent=11 // pred_check_branch
          %338 = sbr.rel (%p336) target = $region28
        $region27: #{tpu_custom_call.1} parent=11 // pred_region
          _
        $region28: #{tpu_custom_call.1} parent=11 // pred_fallthru
          _
        // Predicated region
        $region29: #{tpu_custom_call.1} parent=11 // pred_check
          %p339 = pneg %p196
        $region30: #{tpu_custom_call.1} parent=11 // pred_check_branch
          %341 = sbr.rel (%p339) target = $region32
        $region31: #{tpu_custom_call.1} parent=11 // pred_region
          %s343 = ssub.s32 512, 512
          %344 = vsyncadd [#allocation10], %s343
          %s345 = sshll.u32 [#allocation9], 4
          %s346 = int_to_ptr.vmem [resolvable:$true] %s345
          %351 = dma.hbm_to_vmem [thread:$0]  %s6, 512, %s346, [#allocation10], 128, 128, 8
        $region32: #{tpu_custom_call.1} parent=11 // pred_fallthru
          _
        // Predicated region
        $region33: #{tpu_custom_call.1} parent=11 // pred_check
          %p352 = pneg %p217
        $region34: #{tpu_custom_call.1} parent=11 // pred_check_branch
          %354 = sbr.rel (%p352) target = $region36
        $region35: #{tpu_custom_call.1} parent=11 // pred_region
          %s356 = ssub.s32 16, 16
          %357 = vsyncadd [#allocation10], %s356
          %s359 = sshll.u32 [#allocation11], 4
          %s360 = int_to_ptr.vmem [resolvable:$true] %s359
          %362 = dma.hbm_to_vmem [thread:$0]  %s7, 16, %s360, [#allocation10]
        $region36: #{tpu_custom_call.1} parent=11 // pred_fallthru
          _
        // Predicated region
        $region37: #{tpu_custom_call.1} parent=11 // pred_check
          %p363 = pneg %p238
        $region38: #{tpu_custom_call.1} parent=11 // pred_check_branch
          %365 = sbr.rel (%p363) target = $region40
        $region39: #{tpu_custom_call.1} parent=11 // pred_region
          _
        $region40: #{tpu_custom_call.1} parent=11 // pred_fallthru
          _
        // Predicated region
        $region41: #{tpu_custom_call.1} parent=11 // pred_check
          %p366 = pneg %p259
        $region42: #{tpu_custom_call.1} parent=11 // pred_check_branch
          %368 = sbr.rel (%p366) target = $region44
        $region43: #{tpu_custom_call.1} parent=11 // pred_region
          _
        $region44: #{tpu_custom_call.1} parent=11 // pred_fallthru
          _
      $region12: #{tpu_custom_call.1} parent=5 // pred_fallthru
        _
      %p369 = scmp.lt.s32.totalorder %s22, 2
      // Predicated region
      $region45: #{tpu_custom_call.1} parent=5 // pred_check
        %p370 = pneg %p369
      $region46: #{tpu_custom_call.1} parent=5 // pred_check_branch
        %372 = sbr.rel (%p370) target = $region48
      $region47: #{tpu_custom_call.1} parent=5 // pred_region
        // Predicated region
        $region49: #{tpu_custom_call.1} parent=47 // pred_check
          %p373 = pneg %p80
        $region50: #{tpu_custom_call.1} parent=47 // pred_check_branch
          %375 = sbr.rel (%p373) target = $region52
        $region51: #{tpu_custom_call.1} parent=47 // pred_region
          %s376 = smul.u32 3, %s29
          %p377 = scmp.lt.s32.totalorder %s376, 5
          %s378 = scalar_select %p377, %s376, 5
          %s379 = smul.addr %s378, 8
          %s380 = scalar_lea.vmem %s1, %s379
          %s381 = smul.u32 3, %s29
        $region52: #{tpu_custom_call.1} parent=47 // pred_fallthru
          _
        // Predicated region
        $region53: #{tpu_custom_call.1} parent=47 // pred_check
          %p382 = pneg %p106
        $region54: #{tpu_custom_call.1} parent=47 // pred_check_branch
          %384 = sbr.rel (%p382) target = $region56
        $region55: #{tpu_custom_call.1} parent=47 // pred_region
          %s385 = smul.u32 3, %s29
          %p386 = scmp.lt.s32.totalorder %s385, 5
          %s387 = scalar_select %p386, %s385, 5
          %s388 = smul.addr %s387, 8
          %s389 = scalar_lea.vmem %s2, %s388
          %s390 = smul.u32 3, %s29
        $region56: #{tpu_custom_call.1} parent=47 // pred_fallthru
          _
      $region48: #{tpu_custom_call.1} parent=5 // pred_fallthru
        _
      %p391 = scmp.le.s32.totalorder 1, %s22
      %p392 = scmp.lt.s32.totalorder %s22, 3
      %p393 = pnand %p391, %p392
      %p394 = pneg %p393
      // Predicated region
      $region57: #{tpu_custom_call.1} parent=5 // pred_check
        _
      $region58: #{tpu_custom_call.1} parent=5 // pred_check_branch
        %396 = sbr.rel (%p393) target = $region60
      $region59: #{tpu_custom_call.1} parent=5 // pred_region
        %s397 = ssub.s32 %s22, 1
        // Predicated region
        $region61: #{tpu_custom_call.1} parent=59 // pred_check
          %p398 = pneg %p60
        $region62: #{tpu_custom_call.1} parent=59 // pred_check_branch
          %400 = sbr.rel (%p398) target = $region64
        $region63: #{tpu_custom_call.1} parent=59 // pred_region
          %401 = dma.done [#allocation4], 96
        $region64: #{tpu_custom_call.1} parent=59 // pred_fallthru
          _
        // Predicated region
        $region65: #{tpu_custom_call.1} parent=59 // pred_check
          %p402 = pneg %p133
        $region66: #{tpu_custom_call.1} parent=59 // pred_check_branch
          %404 = sbr.rel (%p402) target = $region68
        $region67: #{tpu_custom_call.1} parent=59 // pred_region
          %405 = dma.done [#allocation7], 128
        $region68: #{tpu_custom_call.1} parent=59 // pred_fallthru
          _
        // Predicated region
        $region69: #{tpu_custom_call.1} parent=59 // pred_check
          %p406 = pneg %p154
        $region70: #{tpu_custom_call.1} parent=59 // pred_check_branch
          %408 = sbr.rel (%p406) target = $region72
        $region71: #{tpu_custom_call.1} parent=59 // pred_region
          %409 = dma.done [#allocation7], 16
        $region72: #{tpu_custom_call.1} parent=59 // pred_fallthru
          _
        // Predicated region
        $region73: #{tpu_custom_call.1} parent=59 // pred_check
          %p410 = pneg %p196
        $region74: #{tpu_custom_call.1} parent=59 // pred_check_branch
          %412 = sbr.rel (%p410) target = $region76
        $region75: #{tpu_custom_call.1} parent=59 // pred_region
          %413 = dma.done [#allocation10], 512
        $region76: #{tpu_custom_call.1} parent=59 // pred_fallthru
          _
        // Predicated region
        $region77: #{tpu_custom_call.1} parent=59 // pred_check
          %p414 = pneg %p217
        $region78: #{tpu_custom_call.1} parent=59 // pred_check_branch
          %416 = sbr.rel (%p414) target = $region80
        $region79: #{tpu_custom_call.1} parent=59 // pred_region
          %417 = dma.done [#allocation10], 16
        $region80: #{tpu_custom_call.1} parent=59 // pred_fallthru
          _
        %p418 = pneg %p60
        %p419 = pneg %p57
        %s420 = smul.u32 3, %s31
        %p421 = scmp.lt.s32.totalorder %s420, 5
        %s422 = scalar_select %p421, %s420, 5
        %s423 = smul.addr %s422, 8
        %s424 = scalar_lea.vmem %s1, %s423
        %p425 = pneg %p86
        %p426 = pneg %p83
        %s427 = smul.u32 3, %s31
        %p428 = scmp.lt.s32.totalorder %s427, 5
        %s429 = scalar_select %p428, %s427, 5
        %s430 = smul.addr %s429, 8
        %s431 = scalar_lea.vmem %s2, %s430
        %p432 = pneg %p112
        %p433 = pneg %p109
        %p434 = pneg %p133
        %p435 = pneg %p130
        %p436 = pneg %p154
        %p437 = pneg %p151
        %p438 = pneg %p175
        %p439 = pneg %p172
        %p440 = pneg %p196
        %p441 = pneg %p193
        %p442 = pneg %p217
        %p443 = pneg %p214
        %p444 = pneg %p238
        %p445 = pneg %p235
        %p446 = pneg %p259
        %p447 = pneg %p256
        %p448 = pneg %p285
        %p449 = pneg %p282
        %s450 = sand.u32 %s272, 1
        %s451 = scalar_lea.sflag [#allocation5], %s450
        %s452 = sand.u32 %s272, 1
        %s453 = smul.addr %s452, 24
        %s454 = scalar_lea.vmem [#allocation12], %s453
        %s455 = smul.u32 3, %s32
        %s456 = smul.u32 3, %s31
        %p457 = scmp.lt.s32.totalorder %s456, 5
        %s458 = scalar_select %p457, %s456, 5
        %s459 = smul.addr %s458, 8
        %s460 = scalar_lea.vmem %s1, %s459
        %s461 = smul.u32 3, %s31
        %s462 = smul.u32 3, %s31
        %p463 = scmp.lt.s32.totalorder %s462, 5
        %s464 = scalar_select %p463, %s462, 5
        %s465 = smul.addr %s464, 8
        %s466 = scalar_lea.vmem %s2, %s465
        %s467 = smul.u32 3, %s31
        %s468 = smul.u32 3, %s31
        %p469 = scmp.eq.s32.totalorder %s32, 0
        // Predicated region
        $region81: #{tpu_custom_call.1} parent=59 // pred_check
          %p470 = pneg %p469
        $region82: #{tpu_custom_call.1} parent=59 // pred_check_branch
          %472 = sbr.rel (%p470) target = $region84
        $region83: #{tpu_custom_call.1} parent=59 // pred_region
          %vm473 = vcmask 64512
          %474 = vst.msk [vmem:[#allocation2] sm:$0xff] %vm473, 4.0
          %475 = vst.msk [vmem:[#allocation2 + $0x8] sm:$0xff] %vm473, 4.0
          %476 = vst.msk [vmem:[#allocation2 + $0x10] sm:$0xff] %vm473, 4.0
        $region84: #{tpu_custom_call.1} parent=59 // pred_fallthru
          _
        %v477 = vld [vmem:[#allocation3] ss:$2 sm:$0x7]
        %s478 = scalar_lea.vmem [#allocation3], 1
        %v479 = vld [vmem:[%s478] ss:$2 sm:$0x7]
        %v480 = vld [vmem:[%s460] sm:$0xff]
        %v481 = vld [vmem:[%s460 + $0x8] sm:$0xff]
        %v482 = vld [vmem:[%s460 + $0x10] sm:$0xff]
        %v484 = vlaneseq
        %v485 = vshrl.u32 %v484, 7
        %v486 = vsub.s32 0, %v485
        %v487 = vrot.slane %v477, %v486
        %v488 = vlaneseq
        %v489 = vshrl.u32 %v488, 7
        %v490 = vsub.s32 1, %v489
        %v491 = vrot.slane %v477, %v490
        %v492 = vlaneseq
        %v493 = vshrl.u32 %v492, 7
        %v494 = vsub.s32 2, %v493
        %v495 = vrot.slane %v477, %v494
        %500 = vset.pattern.permute.xlu0 0
        %501 = vperm.xlu0 %500, %v480
        %v502 = vpop.permute.xlu0 %501
        %505 = vset.pattern.permute.xlu0 0
        %506 = vperm.xlu0 %505, %v481
        %v507 = vpop.permute.xlu0 %506
        %510 = vset.pattern.permute.xlu0 0
        %511 = vperm.xlu0 %510, %v482
        %v512 = vpop.permute.xlu0 %511
        %v514 = vsub.f32 %v487, %v502
        %v515 = vsub.f32 %v491, %v502
        %v516 = vsub.f32 %v495, %v502
        %v517 = vsub.f32 %v487, %v507
        %v518 = vsub.f32 %v491, %v507
        %v519 = vsub.f32 %v495, %v507
        %v520 = vsub.f32 %v487, %v512
        %v521 = vsub.f32 %v491, %v512
        %v522 = vsub.f32 %v495, %v512
        %v524 = vlaneseq
        %v525 = vshrl.u32 %v524, 7
        %v526 = vsub.s32 0, %v525
        %v527 = vrot.slane %v479, %v526
        %v528 = vlaneseq
        %v529 = vshrl.u32 %v528, 7
        %v530 = vsub.s32 1, %v529
        %v531 = vrot.slane %v479, %v530
        %v532 = vlaneseq
        %v533 = vshrl.u32 %v532, 7
        %v534 = vsub.s32 2, %v533
        %v535 = vrot.slane %v479, %v534
        %539 = vset.pattern.permute.xlu0 1
        %540 = vperm.xlu0 %539, %v480
        %v541 = vpop.permute.xlu0 %540
        %543 = vset.pattern.permute.xlu0 1
        %544 = vperm.xlu0 %543, %v481
        %v545 = vpop.permute.xlu0 %544
        %547 = vset.pattern.permute.xlu0 1
        %548 = vperm.xlu0 %547, %v482
        %v549 = vpop.permute.xlu0 %548
        %v551 = vsub.f32 %v527, %v541
        %v552 = vsub.f32 %v531, %v541
        %v553 = vsub.f32 %v535, %v541
        %v554 = vsub.f32 %v527, %v545
        %v555 = vsub.f32 %v531, %v545
        %v556 = vsub.f32 %v535, %v545
        %v557 = vsub.f32 %v527, %v549
        %v558 = vsub.f32 %v531, %v549
        %v559 = vsub.f32 %v535, %v549
        %v560 = vmul.f32 %v514, %v514
        %v561 = vmul.f32 %v515, %v515
        %v562 = vmul.f32 %v516, %v516
        %v563 = vmul.f32 %v517, %v517
        %v564 = vmul.f32 %v518, %v518
        %v565 = vmul.f32 %v519, %v519
        %v566 = vmul.f32 %v520, %v520
        %v567 = vmul.f32 %v521, %v521
        %v568 = vmul.f32 %v522, %v522
        %v569 = vmul.f32 %v551, %v551
        %v570 = vmul.f32 %v552, %v552
        %v571 = vmul.f32 %v553, %v553
        %v572 = vmul.f32 %v554, %v554
        %v573 = vmul.f32 %v555, %v555
        %v574 = vmul.f32 %v556, %v556
        %v575 = vmul.f32 %v557, %v557
        %v576 = vmul.f32 %v558, %v558
        %v577 = vmul.f32 %v559, %v559
        %v578 = vadd.f32 %v560, %v569
        %v579 = vadd.f32 %v561, %v570
        %v580 = vadd.f32 %v562, %v571
        %v581 = vadd.f32 %v563, %v572
        %v582 = vadd.f32 %v564, %v573
        %v583 = vadd.f32 %v565, %v574
        %v584 = vadd.f32 %v566, %v575
        %v585 = vadd.f32 %v567, %v576
        %v586 = vadd.f32 %v568, %v577
        %vm587 = vcmp.le.f32.partialorder %v578, 4.0
        %vm588 = vcmp.le.f32.partialorder %v579, 4.0
        %vm589 = vcmp.le.f32.partialorder %v580, 4.0
        %vm590 = vcmp.le.f32.partialorder %v581, 4.0
        %vm591 = vcmp.le.f32.partialorder %v582, 4.0
        %vm592 = vcmp.le.f32.partialorder %v583, 4.0
        %vm593 = vcmp.le.f32.partialorder %v584, 4.0
        %vm594 = vcmp.le.f32.partialorder %v585, 4.0
        %vm595 = vcmp.le.f32.partialorder %v586, 4.0
        %vm596 = vcmp.gt.f32.partialorder %v578, 1e-18
        %vm597 = vcmp.gt.f32.partialorder %v579, 1e-18
        %vm598 = vcmp.gt.f32.partialorder %v580, 1e-18
        %vm599 = vcmp.gt.f32.partialorder %v581, 1e-18
        %vm600 = vcmp.gt.f32.partialorder %v582, 1e-18
        %vm601 = vcmp.gt.f32.partialorder %v583, 1e-18
        %vm602 = vcmp.gt.f32.partialorder %v584, 1e-18
        %vm603 = vcmp.gt.f32.partialorder %v585, 1e-18
        %vm604 = vcmp.gt.f32.partialorder %v586, 1e-18
        %vm605 = vmand %vm587, %vm596
        %vm606 = vmand %vm588, %vm597
        %vm607 = vmand %vm589, %vm598
        %vm608 = vmand %vm590, %vm599
        %vm609 = vmand %vm591, %vm600
        %vm610 = vmand %vm592, %vm601
        %vm611 = vmand %vm593, %vm602
        %vm612 = vmand %vm594, %vm603
        %vm613 = vmand %vm595, %vm604
        %v614 = vsel %vm605, %v578, 4.0
        %v615 = vsel %vm606, %v579, 4.0
        %v616 = vsel %vm607, %v580, 4.0
        %v617 = vsel %vm608, %v581, 4.0
        %v618 = vsel %vm609, %v582, 4.0
        %v619 = vsel %vm610, %v583, 4.0
        %v620 = vsel %vm611, %v584, 4.0
        %v621 = vsel %vm612, %v585, 4.0
        %v622 = vsel %vm613, %v586, 4.0
        %v623 = vmul.f32 %v578, 0.8535534
        %v624 = vmul.f32 %v579, 0.8535534
        %v625 = vmul.f32 %v580, 0.8535534
        %v626 = vmul.f32 %v581, 0.8535534
        %v627 = vmul.f32 %v582, 0.8535534
        %v628 = vmul.f32 %v583, 0.8535534
        %v629 = vmul.f32 %v584, 0.8535534
        %v630 = vmul.f32 %v585, 0.8535534
        %v631 = vmul.f32 %v586, 0.8535534
        %v632 = vsub.f32 0.0, %v623
        %v633 = vsub.f32 0.0, %v624
        %v634 = vsub.f32 0.0, %v625
        %v635 = vsub.f32 0.0, %v626
        %v636 = vsub.f32 0.0, %v627
        %v637 = vsub.f32 0.0, %v628
        %v638 = vsub.f32 0.0, %v629
        %v639 = vsub.f32 0.0, %v630
        %v640 = vsub.f32 0.0, %v631
        %v641 = vmul.f32 %v551, 0.0
        %v642 = vmul.f32 %v552, 0.0
        %v643 = vmul.f32 %v553, 0.0
        %v644 = vmul.f32 %v554, 0.0
        %v645 = vmul.f32 %v555, 0.0
        %v646 = vmul.f32 %v556, 0.0
        %v647 = vmul.f32 %v557, 0.0
        %v648 = vmul.f32 %v558, 0.0
        %v649 = vmul.f32 %v559, 0.0
        %v650 = vadd.f32 %v514, %v641
        %v651 = vadd.f32 %v515, %v642
        %v652 = vadd.f32 %v516, %v643
        %v653 = vadd.f32 %v517, %v644
        %v654 = vadd.f32 %v518, %v645
        %v655 = vadd.f32 %v519, %v646
        %v656 = vadd.f32 %v520, %v647
        %v657 = vadd.f32 %v521, %v648
        %v658 = vadd.f32 %v522, %v649
        %v659 = vand.u32 2147483647, %v650
        %v660 = vand.u32 2147483647, %v651
        %v661 = vand.u32 2147483647, %v652
        %v662 = vand.u32 2147483647, %v653
        %v663 = vand.u32 2147483647, %v654
        %v664 = vand.u32 2147483647, %v655
        %v665 = vand.u32 2147483647, %v656
        %v666 = vand.u32 2147483647, %v657
        %v667 = vand.u32 2147483647, %v658
        %v668 = vmul.f32 %v650, %v659
        %v669 = vmul.f32 %v651, %v660
        %v670 = vmul.f32 %v652, %v661
        %v671 = vmul.f32 %v653, %v662
        %v672 = vmul.f32 %v654, %v663
        %v673 = vmul.f32 %v655, %v664
        %v674 = vmul.f32 %v656, %v665
        %v675 = vmul.f32 %v657, %v666
        %v676 = vmul.f32 %v658, %v667
        %vm677 = vcmp.ge.f32.partialorder %v668, %v623
        %vm678 = vcmp.ge.f32.partialorder %v669, %v624
        %vm679 = vcmp.ge.f32.partialorder %v670, %v625
        %vm680 = vcmp.ge.f32.partialorder %v671, %v626
        %vm681 = vcmp.ge.f32.partialorder %v672, %v627
        %vm682 = vcmp.ge.f32.partialorder %v673, %v628
        %vm683 = vcmp.ge.f32.partialorder %v674, %v629
        %vm684 = vcmp.ge.f32.partialorder %v675, %v630
        %vm685 = vcmp.ge.f32.partialorder %v676, %v631
        %v686 = vsel %vm677, %v614, 4.0
        %v687 = vsel %vm678, %v615, 4.0
        %v688 = vsel %vm679, %v616, 4.0
        %v689 = vsel %vm680, %v617, 4.0
        %v690 = vsel %vm681, %v618, 4.0
        %v691 = vsel %vm682, %v619, 4.0
        %v692 = vsel %vm683, %v620, 4.0
        %v693 = vsel %vm684, %v621, 4.0
        %v694 = vsel %vm685, %v622, 4.0
        %v695 = vmin.f32 %v686, %v688
        %v696 = vmin.f32 %v695, %v687
        %697 = vmin.xlane.f32.xlu0 %v696
        %v698 = vpop.xlane.xlu0 %697
        %v699 = vmin.f32 %v689, %v691
        %v700 = vmin.f32 %v699, %v690
        %701 = vmin.xlane.f32.xlu0 %v700
        %v702 = vpop.xlane.xlu0 %701
        %v703 = vmin.f32 %v692, %v694
        %v704 = vmin.f32 %v703, %v693
        %705 = vmin.xlane.f32.xlu0 %v704
        %v706 = vpop.xlane.xlu0 %705
        %vm707 = vcmp.le.f32.partialorder %v668, %v632
        %vm708 = vcmp.le.f32.partialorder %v669, %v633
        %vm709 = vcmp.le.f32.partialorder %v670, %v634
        %vm710 = vcmp.le.f32.partialorder %v671, %v635
        %vm711 = vcmp.le.f32.partialorder %v672, %v636
        %vm712 = vcmp.le.f32.partialorder %v673, %v637
        %vm713 = vcmp.le.f32.partialorder %v674, %v638
        %vm714 = vcmp.le.f32.partialorder %v675, %v639
        %vm715 = vcmp.le.f32.partialorder %v676, %v640
        %v716 = vsel %vm707, %v614, 4.0
        %v717 = vsel %vm708, %v615, 4.0
        %v718 = vsel %vm709, %v616, 4.0
        %v719 = vsel %vm710, %v617, 4.0
        %v720 = vsel %vm711, %v618, 4.0
        %v721 = vsel %vm712, %v619, 4.0
        %v722 = vsel %vm713, %v620, 4.0
        %v723 = vsel %vm714, %v621, 4.0
        %v724 = vsel %vm715, %v622, 4.0
        %v725 = vmin.f32 %v716, %v718
        %v726 = vmin.f32 %v725, %v717
        %727 = vmin.xlane.f32.xlu0 %v726
        %v728 = vpop.xlane.xlu0 %727
        %v729 = vmin.f32 %v719, %v721
        %v730 = vmin.f32 %v729, %v720
        %731 = vmin.xlane.f32.xlu0 %v730
        %v732 = vpop.xlane.xlu0 %731
        %v733 = vmin.f32 %v722, %v724
        %v734 = vmin.f32 %v733, %v723
        %735 = vmin.xlane.f32.xlu0 %v734
        %v736 = vpop.xlane.xlu0 %735
        %v737 = vmul.f32 %v514, 0.70710677
        %v738 = vmul.f32 %v515, 0.70710677
        %v739 = vmul.f32 %v516, 0.70710677
        %v740 = vmul.f32 %v517, 0.70710677
        %v741 = vmul.f32 %v518, 0.70710677
        %v742 = vmul.f32 %v519, 0.70710677
        %v743 = vmul.f32 %v520, 0.70710677
        %v744 = vmul.f32 %v521, 0.70710677
        %v745 = vmul.f32 %v522, 0.70710677
        %v746 = vmul.f32 %v551, 0.70710677
        %v747 = vmul.f32 %v552, 0.70710677
        %v748 = vmul.f32 %v553, 0.70710677
        %v749 = vmul.f32 %v554, 0.70710677
        %v750 = vmul.f32 %v555, 0.70710677
        %v751 = vmul.f32 %v556, 0.70710677
        %v752 = vmul.f32 %v557, 0.70710677
        %v753 = vmul.f32 %v558, 0.70710677
        %v754 = vmul.f32 %v559, 0.70710677
        %v755 = vadd.f32 %v737, %v746
        %v756 = vadd.f32 %v738, %v747
        %v757 = vadd.f32 %v739, %v748
        %v758 = vadd.f32 %v740, %v749
        %v759 = vadd.f32 %v741, %v750
        %v760 = vadd.f32 %v742, %v751
        %v761 = vadd.f32 %v743, %v752
        %v762 = vadd.f32 %v744, %v753
        %v763 = vadd.f32 %v745, %v754
        %v764 = vand.u32 2147483647, %v755
        %v765 = vand.u32 2147483647, %v756
        %v766 = vand.u32 2147483647, %v757
        %v767 = vand.u32 2147483647, %v758
        %v768 = vand.u32 2147483647, %v759
        %v769 = vand.u32 2147483647, %v760
        %v770 = vand.u32 2147483647, %v761
        %v771 = vand.u32 2147483647, %v762
        %v772 = vand.u32 2147483647, %v763
        %v773 = vmul.f32 %v755, %v764
        %v774 = vmul.f32 %v756, %v765
        %v775 = vmul.f32 %v757, %v766
        %v776 = vmul.f32 %v758, %v767
        %v777 = vmul.f32 %v759, %v768
        %v778 = vmul.f32 %v760, %v769
        %v779 = vmul.f32 %v761, %v770
        %v780 = vmul.f32 %v762, %v771
        %v781 = vmul.f32 %v763, %v772
        %vm782 = vcmp.ge.f32.partialorder %v773, %v623
        %vm783 = vcmp.ge.f32.partialorder %v774, %v624
        %vm784 = vcmp.ge.f32.partialorder %v775, %v625
        %vm785 = vcmp.ge.f32.partialorder %v776, %v626
        %vm786 = vcmp.ge.f32.partialorder %v777, %v627
        %vm787 = vcmp.ge.f32.partialorder %v778, %v628
        %vm788 = vcmp.ge.f32.partialorder %v779, %v629
        %vm789 = vcmp.ge.f32.partialorder %v780, %v630
        %vm790 = vcmp.ge.f32.partialorder %v781, %v631
        %v791 = vsel %vm782, %v614, 4.0
        %v792 = vsel %vm783, %v615, 4.0
        %v793 = vsel %vm784, %v616, 4.0
        %v794 = vsel %vm785, %v617, 4.0
        %v795 = vsel %vm786, %v618, 4.0
        %v796 = vsel %vm787, %v619, 4.0
        %v797 = vsel %vm788, %v620, 4.0
        %v798 = vsel %vm789, %v621, 4.0
        %v799 = vsel %vm790, %v622, 4.0
        %v800 = vmin.f32 %v791, %v793
        %v801 = vmin.f32 %v800, %v792
        %802 = vmin.xlane.f32.xlu0 %v801
        %v803 = vpop.xlane.xlu0 %802
        %v804 = vmin.f32 %v794, %v796
        %v805 = vmin.f32 %v804, %v795
        %806 = vmin.xlane.f32.xlu0 %v805
        %v807 = vpop.xlane.xlu0 %806
        %v808 = vmin.f32 %v797, %v799
        %v809 = vmin.f32 %v808, %v798
        %810 = vmin.xlane.f32.xlu0 %v809
        %v811 = vpop.xlane.xlu0 %810
        %vm812 = vcmp.le.f32.partialorder %v773, %v632
        %vm813 = vcmp.le.f32.partialorder %v774, %v633
        %vm814 = vcmp.le.f32.partialorder %v775, %v634
        %vm815 = vcmp.le.f32.partialorder %v776, %v635
        %vm816 = vcmp.le.f32.partialorder %v777, %v636
        %vm817 = vcmp.le.f32.partialorder %v778, %v637
        %vm818 = vcmp.le.f32.partialorder %v779, %v638
        %vm819 = vcmp.le.f32.partialorder %v780, %v639
        %vm820 = vcmp.le.f32.partialorder %v781, %v640
        %v821 = vsel %vm812, %v614, 4.0
        %v822 = vsel %vm813, %v615, 4.0
        %v823 = vsel %vm814, %v616, 4.0
        %v824 = vsel %vm815, %v617, 4.0
        %v825 = vsel %vm816, %v618, 4.0
        %v826 = vsel %vm817, %v619, 4.0
        %v827 = vsel %vm818, %v620, 4.0
        %v828 = vsel %vm819, %v621, 4.0
        %v829 = vsel %vm820, %v622, 4.0
        %v830 = vmin.f32 %v821, %v823
        %v831 = vmin.f32 %v830, %v822
        %832 = vmin.xlane.f32.xlu0 %v831
        %v833 = vpop.xlane.xlu0 %832
        %v834 = vmin.f32 %v824, %v826
        %v835 = vmin.f32 %v834, %v825
        %836 = vmin.xlane.f32.xlu0 %v835
        %v837 = vpop.xlane.xlu0 %836
        %v838 = vmin.f32 %v827, %v829
        %v839 = vmin.f32 %v838, %v828
        %840 = vmin.xlane.f32.xlu0 %v839
        %v841 = vpop.xlane.xlu0 %840
        %v842 = vmul.f32 %v514, 6.123234e-17
        %v843 = vmul.f32 %v515, 6.123234e-17
        %v844 = vmul.f32 %v516, 6.123234e-17
        %v845 = vmul.f32 %v517, 6.123234e-17
        %v846 = vmul.f32 %v518, 6.123234e-17
        %v847 = vmul.f32 %v519, 6.123234e-17
        %v848 = vmul.f32 %v520, 6.123234e-17
        %v849 = vmul.f32 %v521, 6.123234e-17
        %v850 = vmul.f32 %v522, 6.123234e-17
        %v851 = vadd.f32 %v842, %v551
        %v852 = vadd.f32 %v843, %v552
        %v853 = vadd.f32 %v844, %v553
        %v854 = vadd.f32 %v845, %v554
        %v855 = vadd.f32 %v846, %v555
        %v856 = vadd.f32 %v847, %v556
        %v857 = vadd.f32 %v848, %v557
        %v858 = vadd.f32 %v849, %v558
        %v859 = vadd.f32 %v850, %v559
        %v860 = vand.u32 2147483647, %v851
        %v861 = vand.u32 2147483647, %v852
        %v862 = vand.u32 2147483647, %v853
        %v863 = vand.u32 2147483647, %v854
        %v864 = vand.u32 2147483647, %v855
        %v865 = vand.u32 2147483647, %v856
        %v866 = vand.u32 2147483647, %v857
        %v867 = vand.u32 2147483647, %v858
        %v868 = vand.u32 2147483647, %v859
        %v869 = vmul.f32 %v851, %v860
        %v870 = vmul.f32 %v852, %v861
        %v871 = vmul.f32 %v853, %v862
        %v872 = vmul.f32 %v854, %v863
        %v873 = vmul.f32 %v855, %v864
        %v874 = vmul.f32 %v856, %v865
        %v875 = vmul.f32 %v857, %v866
        %v876 = vmul.f32 %v858, %v867
        %v877 = vmul.f32 %v859, %v868
        %vm878 = vcmp.ge.f32.partialorder %v869, %v623
        %vm879 = vcmp.ge.f32.partialorder %v870, %v624
        %vm880 = vcmp.ge.f32.partialorder %v871, %v625
        %vm881 = vcmp.ge.f32.partialorder %v872, %v626
        %vm882 = vcmp.ge.f32.partialorder %v873, %v627
        %vm883 = vcmp.ge.f32.partialorder %v874, %v628
        %vm884 = vcmp.ge.f32.partialorder %v875, %v629
        %vm885 = vcmp.ge.f32.partialorder %v876, %v630
        %vm886 = vcmp.ge.f32.partialorder %v877, %v631
        %v887 = vsel %vm878, %v614, 4.0
        %v888 = vsel %vm879, %v615, 4.0
        %v889 = vsel %vm880, %v616, 4.0
        %v890 = vsel %vm881, %v617, 4.0
        %v891 = vsel %vm882, %v618, 4.0
        %v892 = vsel %vm883, %v619, 4.0
        %v893 = vsel %vm884, %v620, 4.0
        %v894 = vsel %vm885, %v621, 4.0
        %v895 = vsel %vm886, %v622, 4.0
        %v896 = vmin.f32 %v887, %v889
        %v897 = vmin.f32 %v896, %v888
        %898 = vmin.xlane.f32.xlu0 %v897
        %v899 = vpop.xlane.xlu0 %898
        %v900 = vmin.f32 %v890, %v892
        %v901 = vmin.f32 %v900, %v891
        %902 = vmin.xlane.f32.xlu0 %v901
        %v903 = vpop.xlane.xlu0 %902
        %v904 = vmin.f32 %v893, %v895
        %v905 = vmin.f32 %v904, %v894
        %906 = vmin.xlane.f32.xlu0 %v905
        %v907 = vpop.xlane.xlu0 %906
        %vm908 = vcmp.le.f32.partialorder %v869, %v632
        %vm909 = vcmp.le.f32.partialorder %v870, %v633
        %vm910 = vcmp.le.f32.partialorder %v871, %v634
        %vm911 = vcmp.le.f32.partialorder %v872, %v635
        %vm912 = vcmp.le.f32.partialorder %v873, %v636
        %vm913 = vcmp.le.f32.partialorder %v874, %v637
        %vm914 = vcmp.le.f32.partialorder %v875, %v638
        %vm915 = vcmp.le.f32.partialorder %v876, %v639
        %vm916 = vcmp.le.f32.partialorder %v877, %v640
        %v917 = vsel %vm908, %v614, 4.0
        %v918 = vsel %vm909, %v615, 4.0
        %v919 = vsel %vm910, %v616, 4.0
        %v920 = vsel %vm911, %v617, 4.0
        %v921 = vsel %vm912, %v618, 4.0
        %v922 = vsel %vm913, %v619, 4.0
        %v923 = vsel %vm914, %v620, 4.0
        %v924 = vsel %vm915, %v621, 4.0
        %v925 = vsel %vm916, %v622, 4.0
        %v926 = vmin.f32 %v917, %v919
        %v927 = vmin.f32 %v926, %v918
        %928 = vmin.xlane.f32.xlu0 %v927
        %v929 = vpop.xlane.xlu0 %928
        %v930 = vmin.f32 %v920, %v922
        %v931 = vmin.f32 %v930, %v921
        %932 = vmin.xlane.f32.xlu0 %v931
        %v933 = vpop.xlane.xlu0 %932
        %v934 = vmin.f32 %v923, %v925
        %v935 = vmin.f32 %v934, %v924
        %936 = vmin.xlane.f32.xlu0 %v935
        %v937 = vpop.xlane.xlu0 %936
        %v938 = vmul.f32 %v514, -0.70710677
        %v939 = vmul.f32 %v515, -0.70710677
        %v940 = vmul.f32 %v516, -0.70710677
        %v941 = vmul.f32 %v517, -0.70710677
        %v942 = vmul.f32 %v518, -0.70710677
        %v943 = vmul.f32 %v519, -0.70710677
        %v944 = vmul.f32 %v520, -0.70710677
        %v945 = vmul.f32 %v521, -0.70710677
        %v946 = vmul.f32 %v522, -0.70710677
        %v947 = vadd.f32 %v938, %v746
        %v948 = vadd.f32 %v939, %v747
        %v949 = vadd.f32 %v940, %v748
        %v950 = vadd.f32 %v941, %v749
        %v951 = vadd.f32 %v942, %v750
        %v952 = vadd.f32 %v943, %v751
        %v953 = vadd.f32 %v944, %v752
        %v954 = vadd.f32 %v945, %v753
        %v955 = vadd.f32 %v946, %v754
        %v956 = vand.u32 2147483647, %v947
        %v957 = vand.u32 2147483647, %v948
        %v958 = vand.u32 2147483647, %v949
        %v959 = vand.u32 2147483647, %v950
        %v960 = vand.u32 2147483647, %v951
        %v961 = vand.u32 2147483647, %v952
        %v962 = vand.u32 2147483647, %v953
        %v963 = vand.u32 2147483647, %v954
        %v964 = vand.u32 2147483647, %v955
        %v965 = vmul.f32 %v947, %v956
        %v966 = vmul.f32 %v948, %v957
        %v967 = vmul.f32 %v949, %v958
        %v968 = vmul.f32 %v950, %v959
        %v969 = vmul.f32 %v951, %v960
        %v970 = vmul.f32 %v952, %v961
        %v971 = vmul.f32 %v953, %v962
        %v972 = vmul.f32 %v954, %v963
        %v973 = vmul.f32 %v955, %v964
        %vm974 = vcmp.ge.f32.partialorder %v965, %v623
        %vm975 = vcmp.ge.f32.partialorder %v966, %v624
        %vm976 = vcmp.ge.f32.partialorder %v967, %v625
        %vm977 = vcmp.ge.f32.partialorder %v968, %v626
        %vm978 = vcmp.ge.f32.partialorder %v969, %v627
        %vm979 = vcmp.ge.f32.partialorder %v970, %v628
        %vm980 = vcmp.ge.f32.partialorder %v971, %v629
        %vm981 = vcmp.ge.f32.partialorder %v972, %v630
        %vm982 = vcmp.ge.f32.partialorder %v973, %v631
        %v983 = vsel %vm974, %v614, 4.0
        %v984 = vsel %vm975, %v615, 4.0
        %v985 = vsel %vm976, %v616, 4.0
        %v986 = vsel %vm977, %v617, 4.0
        %v987 = vsel %vm978, %v618, 4.0
        %v988 = vsel %vm979, %v619, 4.0
        %v989 = vsel %vm980, %v620, 4.0
        %v990 = vsel %vm981, %v621, 4.0
        %v991 = vsel %vm982, %v622, 4.0
        %v992 = vmin.f32 %v983, %v985
        %v993 = vmin.f32 %v992, %v984
        %994 = vmin.xlane.f32.xlu0 %v993
        %v995 = vpop.xlane.xlu0 %994
        %v996 = vmin.f32 %v986, %v988
        %v997 = vmin.f32 %v996, %v987
        %998 = vmin.xlane.f32.xlu0 %v997
        %v999 = vpop.xlane.xlu0 %998
        %v1000 = vmin.f32 %v989, %v991
        %v1001 = vmin.f32 %v1000, %v990
        %1002 = vmin.xlane.f32.xlu0 %v1001
        %v1003 = vpop.xlane.xlu0 %1002
        %vm1004 = vcmp.le.f32.partialorder %v965, %v632
        %vm1005 = vcmp.le.f32.partialorder %v966, %v633
        %vm1006 = vcmp.le.f32.partialorder %v967, %v634
        %vm1007 = vcmp.le.f32.partialorder %v968, %v635
        %vm1008 = vcmp.le.f32.partialorder %v969, %v636
        %vm1009 = vcmp.le.f32.partialorder %v970, %v637
        %vm1010 = vcmp.le.f32.partialorder %v971, %v638
        %vm1011 = vcmp.le.f32.partialorder %v972, %v639
        %vm1012 = vcmp.le.f32.partialorder %v973, %v640
        %v1013 = vsel %vm1004, %v614, 4.0
        %v1014 = vsel %vm1005, %v615, 4.0
        %v1015 = vsel %vm1006, %v616, 4.0
        %v1016 = vsel %vm1007, %v617, 4.0
        %v1017 = vsel %vm1008, %v618, 4.0
        %v1018 = vsel %vm1009, %v619, 4.0
        %v1019 = vsel %vm1010, %v620, 4.0
        %v1020 = vsel %vm1011, %v621, 4.0
        %v1021 = vsel %vm1012, %v622, 4.0
        %v1022 = vmin.f32 %v1013, %v1015
        %v1023 = vmin.f32 %v1022, %v1014
        %1024 = vmin.xlane.f32.xlu0 %v1023
        %v1025 = vpop.xlane.xlu0 %1024
        %v1026 = vmin.f32 %v1016, %v1018
        %v1027 = vmin.f32 %v1026, %v1017
        %1028 = vmin.xlane.f32.xlu0 %v1027
        %v1029 = vpop.xlane.xlu0 %1028
        %v1030 = vmin.f32 %v1019, %v1021
        %v1031 = vmin.f32 %v1030, %v1020
        %1032 = vmin.xlane.f32.xlu0 %v1031
        %v1033 = vpop.xlane.xlu0 %1032
        %vm1034 = vcmask 7168
        %v1035 = vsel %vm1034, %v698, %v803
        %v1036 = vsel %vm1034, %v702, %v807
        %v1037 = vsel %vm1034, %v706, %v811
        %vm1038 = vcmask 15360
        %v1039 = vsel %vm1038, %v1035, %v899
        %v1040 = vsel %vm1038, %v1036, %v903
        %v1041 = vsel %vm1038, %v1037, %v907
        %vm1042 = vcmask 23552
        %v1043 = vsel %vm1042, %v1039, %v995
        %v1044 = vsel %vm1042, %v1040, %v999
        %v1045 = vsel %vm1042, %v1041, %v1003
        %vm1046 = vcmask 31744
        %v1047 = vsel %vm1046, %v1043, %v728
        %v1048 = vsel %vm1046, %v1044, %v732
        %v1049 = vsel %vm1046, %v1045, %v736
        %vm1050 = vcmask 39936
        %v1051 = vsel %vm1050, %v1047, %v833
        %v1052 = vsel %vm1050, %v1048, %v837
        %v1053 = vsel %vm1050, %v1049, %v841
        %vm1054 = vcmask 48128
        %v1055 = vsel %vm1054, %v1051, %v929
        %v1056 = vsel %vm1054, %v1052, %v933
        %v1057 = vsel %vm1054, %v1053, %v937
        %vm1058 = vcmask 56320
        %v1059 = vsel %vm1058, %v1055, %v1025
        %v1060 = vsel %vm1058, %v1056, %v1029
        %v1061 = vsel %vm1058, %v1057, %v1033
        %v1062 = vld [vmem:[#allocation2] sm:$0xff]
        %v1063 = vld [vmem:[#allocation2 + $0x8] sm:$0xff]
        %v1064 = vld [vmem:[#allocation2 + $0x10] sm:$0xff]
        %v1065 = vmin.f32 %v1062, %v1059
        %v1066 = vmin.f32 %v1063, %v1060
        %v1067 = vmin.f32 %v1064, %v1061
        %vm1068 = vcmask 64512
        %1069 = vst.msk [vmem:[#allocation2] sm:$0xff] %vm1068, %v1065
        %1070 = vst.msk [vmem:[#allocation2 + $0x8] sm:$0xff] %vm1068, %v1066
        %1071 = vst.msk [vmem:[#allocation2 + $0x10] sm:$0xff] %vm1068, %v1067
        // Predicated region
        $region85: #{tpu_custom_call.1} parent=59 // pred_check
          %p1072 = pneg %p469
        $region86: #{tpu_custom_call.1} parent=59 // pred_check_branch
          %1074 = sbr.rel (%p1072) target = $region88
        $region87: #{tpu_custom_call.1} parent=59 // pred_region
          %v1075 = vld [vmem:[#allocation2] sm:$0xff]
          %v1076 = vld [vmem:[#allocation2 + $0x8] sm:$0xff]
          %v1077 = vld [vmem:[#allocation2 + $0x10] sm:$0xff]
          %v1078 = vrsqrt.pop %v1075
          %v1079 = vmul.f32 %v1075, %v1078
          %vm1080 = vcmp.eq.f32.partialorder %v1075, inf
          %v1081 = vsel %vm1080, %v1075, %v1079
          %vm1082 = vcmp.eq.f32.partialorder %v1075, 0.0
          %v1083 = vand.u32 %v1075, 2147483648
          %v1084 = vsel %vm1082, %v1083, %v1081
          %v1085 = vrsqrt.pop %v1076
          %v1086 = vmul.f32 %v1076, %v1085
          %vm1087 = vcmp.eq.f32.partialorder %v1076, inf
          %v1088 = vsel %vm1087, %v1076, %v1086
          %vm1089 = vcmp.eq.f32.partialorder %v1076, 0.0
          %v1090 = vand.u32 %v1076, 2147483648
          %v1091 = vsel %vm1089, %v1090, %v1088
          %v1092 = vrsqrt.pop %v1077
          %v1093 = vmul.f32 %v1077, %v1092
          %vm1094 = vcmp.eq.f32.partialorder %v1077, inf
          %v1095 = vsel %vm1094, %v1077, %v1093
          %vm1096 = vcmp.eq.f32.partialorder %v1077, 0.0
          %v1097 = vand.u32 %v1077, 2147483648
          %v1098 = vsel %vm1096, %v1097, %v1095
          %v1099 = vld [vmem:[#allocation6] sm:$0xff]
          %v1100 = vld [vmem:[#allocation8] sm:$0x1]
          %v1102 = vlaneseq
          %v1103 = vshrl.u32 %v1102, 7
          %v1104 = vsub.s32 0, %v1103
          %v1105 = vrot.slane %v1100, %v1104
          %v1108 = vsel %vm1068, %v1084, 0
          %v1111 = vsel %vm1068, %v1091, 0
          %v1114 = vsel %vm1068, %v1098, 0
          %1116 = vmatprep.subr.mxu0 0.0
          %1117 = vmatpush1.msra.mxu0 %v1099
          %1118 = vmatprep.subr.mxu0 0.0
          %1119 = vmatpush1.msra.mxu0 0.0
          %1120 = vmatprep.subr.mxu0 0.0
          %1121 = vmatpush1.msra.mxu0 0.0
          %1122 = vmatprep.subr.mxu0 0.0
          %1123 = vmatpush1.msra.mxu0 0.0
          %1124 = vmatprep.subr.mxu0 0.0
          %1125 = vmatpush1.msra.mxu0 0.0
          %1126 = vmatprep.subr.mxu0 0.0
          %1127 = vmatpush1.msra.mxu0 0.0
          %1128 = vmatprep.subr.mxu0 0.0
          %1129 = vmatpush1.msra.mxu0 0.0
          %1130 = vmatprep.subr.mxu0 0.0
          %1131 = vmatpush1.msra.mxu0 0.0
          %1132 = vmatprep.subr.mxu0 0.0
          %1133 = vmatpush1.msra.mxu0 0.0
          %1134 = vmatprep.subr.mxu0 0.0
          %1135 = vmatpush1.msra.mxu0 0.0
          %1136 = vmatprep.subr.mxu0 0.0
          %1137 = vmatpush1.msra.mxu0 0.0
          %1138 = vmatprep.subr.mxu0 0.0
          %1139 = vmatpush1.msra.mxu0 0.0
          %1140 = vmatprep.subr.mxu0 0.0
          %1141 = vmatpush1.msra.mxu0 0.0
          %1142 = vmatprep.subr.mxu0 0.0
          %1143 = vmatpush1.msra.mxu0 0.0
          %1144 = vmatprep.subr.mxu0 0.0
          %1145 = vmatpush1.msra.mxu0 0.0
          %1146 = vmatprep.subr.mxu0 0.0
          %1147 = vmatpush1.msra.mxu0 0.0
          %1148 = vmatprep.subr.mxu0 0.0
          %1149 = vmatpush1.msra.mxu0 0.0
          %1150 = vmatprep.subr.mxu0 0.0
          %1151 = vmatpush1.msra.mxu0 0.0
          %1152 = vmatprep.subr.mxu0 0.0
          %1153 = vmatpush1.msra.mxu0 0.0
          %1154 = vmatprep.subr.mxu0 0.0
          %1155 = vmatpush1.msra.mxu0 0.0
          %1156 = vmatprep.subr.mxu0 0.0
          %1157 = vmatpush1.msra.mxu0 0.0
          %1158 = vmatprep.subr.mxu0 0.0
          %1159 = vmatpush1.msra.mxu0 0.0
          %1160 = vmatprep.subr.mxu0 0.0
          %1161 = vmatpush1.msra.mxu0 0.0
          %1162 = vmatprep.subr.mxu0 0.0
          %1163 = vmatpush1.msra.mxu0 0.0
          %1164 = vmatprep.subr.mxu0 0.0
          %1165 = vmatpush1.msra.mxu0 0.0
          %1166 = vmatprep.subr.mxu0 0.0
          %1167 = vmatpush1.msra.mxu0 0.0
          %1168 = vmatprep.subr.mxu0 0.0
          %1169 = vmatpush1.msra.mxu0 0.0
          %1170 = vmatprep.subr.mxu0 0.0
          %1171 = vmatpush1.msra.mxu0 0.0
          %1172 = vmatprep.subr.mxu0 0.0
          %1173 = vmatpush1.msra.mxu0 0.0
          %1174 = vmatprep.subr.mxu0 0.0
          %1175 = vmatpush1.msra.mxu0 0.0
          %1176 = vmatprep.subr.mxu0 0.0
          %1177 = vmatpush1.msra.mxu0 0.0
          %1178 = vmatprep.subr.mxu0 0.0
          %1179 = vmatpush1.msra.mxu0 0.0
          %1180 = vmatprep.mubr.f32.mxu0 0.0
          %1181 = vmatmul.mubr.f32.gmra.mrb[0].mxu0 %v1108
          %v1182 = vpop.f32.mrb[0].mxu0
          %v1183 = vadd.f32 %v1105, %v1182
          %v1184 = vpop.f32.mrb[0].mxu0
          %1185 = vmatprep.mubr.f32.mxu0 0.0
          %1186 = vmatmul.mubr.f32.gmra.mrb[0].mxu0 %v1111
          %v1187 = vpop.f32.mrb[0].mxu0
          %v1188 = vadd.f32 %v1105, %v1187
          %v1189 = vpop.f32.mrb[0].mxu0
          %1190 = vmatprep.mubr.f32.mxu0 0.0
          %1191 = vmatmul.mubr.f32.gmra.mrb[0].mxu0 %v1114
          %v1192 = vpop.f32.mrb[0].mxu0
          %v1193 = vadd.f32 %v1105, %v1192
          %v1194 = vpop.f32.mrb[0].mxu0
          %1195 = vdwg.mxu0
          %v1196 = vld [vmem:[%s5] sm:$0xff]
          %v1197 = vld [vmem:[%s5 + $0x8] sm:$0xff]
          %v1198 = vld [vmem:[%s5 + $0x10] sm:$0xff]
          %v1199 = vld [vmem:[%s5 + $0x18] sm:$0xff]
          %v1200 = vld [vmem:[%s466] sm:$0xff]
          %v1201 = vld [vmem:[%s466 + $0x8] sm:$0xff]
          %v1202 = vld [vmem:[%s466 + $0x10] sm:$0xff]
          %v1203 = vld [vmem:[#allocation9] sm:$0xff]
          %v1204 = vld [vmem:[#allocation9 + $0x8] sm:$0xff]
          %v1205 = vld [vmem:[#allocation9 + $0x10] sm:$0xff]
          %v1206 = vld [vmem:[#allocation9 + $0x18] sm:$0xff]
          %vm1207 = vcmask 261120
          %v1209 = vsel %vm1207, %v1200, 0
          %v1212 = vsel %vm1207, %v1201, 0
          %v1215 = vsel %vm1207, %v1202, 0
          %1217 = vmatprep.subr.mxu0 0.0
          %1218 = vmatpush1.msra.mxu0 %v1203
          %1219 = vmatprep.subr.mxu0 0.0
          %1220 = vmatpush1.msra.mxu0 %v1204
          %1221 = vmatprep.subr.mxu0 0.0
          %1222 = vmatpush1.msra.mxu0 %v1205
          %1223 = vmatprep.subr.mxu0 0.0
          %1224 = vmatpush1.msra.mxu0 %v1206
          %1225 = vmatprep.subr.mxu0 0.0
          %1226 = vmatpush1.msra.mxu0 0.0
          %1227 = vmatprep.subr.mxu0 0.0
          %1228 = vmatpush1.msra.mxu0 0.0
          %1229 = vmatprep.subr.mxu0 0.0
          %1230 = vmatpush1.msra.mxu0 0.0
          %1231 = vmatprep.subr.mxu0 0.0
          %1232 = vmatpush1.msra.mxu0 0.0
          %1233 = vmatprep.subr.mxu0 0.0
          %1234 = vmatpush1.msra.mxu0 0.0
          %1235 = vmatprep.subr.mxu0 0.0
          %1236 = vmatpush1.msra.mxu0 0.0
          %1237 = vmatprep.subr.mxu0 0.0
          %1238 = vmatpush1.msra.mxu0 0.0
          %1239 = vmatprep.subr.mxu0 0.0
          %1240 = vmatpush1.msra.mxu0 0.0
          %1241 = vmatprep.subr.mxu0 0.0
          %1242 = vmatpush1.msra.mxu0 0.0
          %1243 = vmatprep.subr.mxu0 0.0
          %1244 = vmatpush1.msra.mxu0 0.0
          %1245 = vmatprep.subr.mxu0 0.0
          %1246 = vmatpush1.msra.mxu0 0.0
          %1247 = vmatprep.subr.mxu0 0.0
          %1248 = vmatpush1.msra.mxu0 0.0
          %1249 = vmatprep.subr.mxu0 0.0
          %1250 = vmatpush1.msra.mxu0 0.0
          %1251 = vmatprep.subr.mxu0 0.0
          %1252 = vmatpush1.msra.mxu0 0.0
          %1253 = vmatprep.subr.mxu0 0.0
          %1254 = vmatpush1.msra.mxu0 0.0
          %1255 = vmatprep.subr.mxu0 0.0
          %1256 = vmatpush1.msra.mxu0 0.0
          %1257 = vmatprep.subr.mxu0 0.0
          %1258 = vmatpush1.msra.mxu0 0.0
          %1259 = vmatprep.subr.mxu0 0.0
          %1260 = vmatpush1.msra.mxu0 0.0
          %1261 = vmatprep.subr.mxu0 0.0
          %1262 = vmatpush1.msra.mxu0 0.0
          %1263 = vmatprep.subr.mxu0 0.0
          %1264 = vmatpush1.msra.mxu0 0.0
          %1265 = vmatprep.subr.mxu0 0.0
          %1266 = vmatpush1.msra.mxu0 0.0
          %1267 = vmatprep.subr.mxu0 0.0
          %1268 = vmatpush1.msra.mxu0 0.0
          %1269 = vmatprep.subr.mxu0 0.0
          %1270 = vmatpush1.msra.mxu0 0.0
          %1271 = vmatprep.subr.mxu0 0.0
          %1272 = vmatpush1.msra.mxu0 0.0
          %1273 = vmatprep.subr.mxu0 0.0
          %1274 = vmatpush1.msra.mxu0 0.0
          %1275 = vmatprep.subr.mxu0 0.0
          %1276 = vmatpush1.msra.mxu0 0.0
          %1277 = vmatprep.subr.mxu0 0.0
          %1278 = vmatpush1.msra.mxu0 0.0
          %1279 = vmatprep.subr.mxu0 0.0
          %1280 = vmatpush1.msra.mxu0 0.0
          %1281 = vmatprep.mubr.f32.mxu0 0.0
          %1282 = vmatmul.mubr.f32.gmra.mrb[0].mxu0 %v1209
          %v1283 = vpop.f32.mrb[0].mxu0
          %v1284 = vadd.f32 0.0, %v1283
          %v1285 = vpop.f32.mrb[0].mxu0
          %1286 = vmatprep.mubr.f32.mxu0 0.0
          %1287 = vmatmul.mubr.f32.gmra.mrb[0].mxu0 %v1212
          %v1288 = vpop.f32.mrb[0].mxu0
          %v1289 = vadd.f32 0.0, %v1288
          %v1290 = vpop.f32.mrb[0].mxu0
          %1291 = vmatprep.mubr.f32.mxu0 0.0
          %1292 = vmatmul.mubr.f32.gmra.mrb[0].mxu0 %v1215
          %v1293 = vpop.f32.mrb[0].mxu0
          %v1294 = vadd.f32 0.0, %v1293
          %v1295 = vpop.f32.mrb[0].mxu0
          %1296 = vdwg.mxu0
          %v1298 = vsel %vm1207, %v1183, 0
          %v1301 = vsel %vm1207, %v1188, 0
          %v1304 = vsel %vm1207, %v1193, 0
          %1306 = vmatprep.subr.mxu0 0.0
          %1307 = vmatpush1.msra.mxu0 %v1196
          %1308 = vmatprep.subr.mxu0 0.0
          %1309 = vmatpush1.msra.mxu0 %v1197
          %1310 = vmatprep.subr.mxu0 0.0
          %1311 = vmatpush1.msra.mxu0 %v1198
          %1312 = vmatprep.subr.mxu0 0.0
          %1313 = vmatpush1.msra.mxu0 %v1199
          %1314 = vmatprep.subr.mxu0 0.0
          %1315 = vmatpush1.msra.mxu0 0.0
          %1316 = vmatprep.subr.mxu0 0.0
          %1317 = vmatpush1.msra.mxu0 0.0
          %1318 = vmatprep.subr.mxu0 0.0
          %1319 = vmatpush1.msra.mxu0 0.0
          %1320 = vmatprep.subr.mxu0 0.0
          %1321 = vmatpush1.msra.mxu0 0.0
          %1322 = vmatprep.subr.mxu0 0.0
          %1323 = vmatpush1.msra.mxu0 0.0
          %1324 = vmatprep.subr.mxu0 0.0
          %1325 = vmatpush1.msra.mxu0 0.0
          %1326 = vmatprep.subr.mxu0 0.0
          %1327 = vmatpush1.msra.mxu0 0.0
          %1328 = vmatprep.subr.mxu0 0.0
          %1329 = vmatpush1.msra.mxu0 0.0
          %1330 = vmatprep.subr.mxu0 0.0
          %1331 = vmatpush1.msra.mxu0 0.0
          %1332 = vmatprep.subr.mxu0 0.0
          %1333 = vmatpush1.msra.mxu0 0.0
          %1334 = vmatprep.subr.mxu0 0.0
          %1335 = vmatpush1.msra.mxu0 0.0
          %1336 = vmatprep.subr.mxu0 0.0
          %1337 = vmatpush1.msra.mxu0 0.0
          %1338 = vmatprep.subr.mxu0 0.0
          %1339 = vmatpush1.msra.mxu0 0.0
          %1340 = vmatprep.subr.mxu0 0.0
          %1341 = vmatpush1.msra.mxu0 0.0
          %1342 = vmatprep.subr.mxu0 0.0
          %1343 = vmatpush1.msra.mxu0 0.0
          %1344 = vmatprep.subr.mxu0 0.0
          %1345 = vmatpush1.msra.mxu0 0.0
          %1346 = vmatprep.subr.mxu0 0.0
          %1347 = vmatpush1.msra.mxu0 0.0
          %1348 = vmatprep.subr.mxu0 0.0
          %1349 = vmatpush1.msra.mxu0 0.0
          %1350 = vmatprep.subr.mxu0 0.0
          %1351 = vmatpush1.msra.mxu0 0.0
          %1352 = vmatprep.subr.mxu0 0.0
          %1353 = vmatpush1.msra.mxu0 0.0
          %1354 = vmatprep.subr.mxu0 0.0
          %1355 = vmatpush1.msra.mxu0 0.0
          %1356 = vmatprep.subr.mxu0 0.0
          %1357 = vmatpush1.msra.mxu0 0.0
          %1358 = vmatprep.subr.mxu0 0.0
          %1359 = vmatpush1.msra.mxu0 0.0
          %1360 = vmatprep.subr.mxu0 0.0
          %1361 = vmatpush1.msra.mxu0 0.0
          %1362 = vmatprep.subr.mxu0 0.0
          %1363 = vmatpush1.msra.mxu0 0.0
          %1364 = vmatprep.subr.mxu0 0.0
          %1365 = vmatpush1.msra.mxu0 0.0
          %1366 = vmatprep.subr.mxu0 0.0
          %1367 = vmatpush1.msra.mxu0 0.0
          %1368 = vmatprep.subr.mxu0 0.0
          %1369 = vmatpush1.msra.mxu0 0.0
          %1370 = vmatprep.mubr.f32.mxu0 0.0
          %1371 = vmatmul.mubr.f32.gmra.mrb[0].mxu0 %v1298
          %v1372 = vpop.f32.mrb[0].mxu0
          %v1373 = vadd.f32 %v1284, %v1372
          %v1374 = vpop.f32.mrb[0].mxu0
          %1375 = vmatprep.mubr.f32.mxu0 0.0
          %1376 = vmatmul.mubr.f32.gmra.mrb[0].mxu0 %v1301
          %v1377 = vpop.f32.mrb[0].mxu0
          %v1378 = vadd.f32 %v1289, %v1377
          %v1379 = vpop.f32.mrb[0].mxu0
          %1380 = vmatprep.mubr.f32.mxu0 0.0
          %1381 = vmatmul.mubr.f32.gmra.mrb[0].mxu0 %v1304
          %v1382 = vpop.f32.mrb[0].mxu0
          %v1383 = vadd.f32 %v1294, %v1382
          %v1384 = vpop.f32.mrb[0].mxu0
          %1385 = vdwg.mxu0
          %v1386 = vld [vmem:[#allocation11] sm:$0x1]
          %v1388 = vlaneseq
          %v1389 = vshrl.u32 %v1388, 7
          %v1390 = vsub.s32 0, %v1389
          %v1391 = vrot.slane %v1386, %v1390
          %v1393 = vadd.f32 %v1373, %v1391
          %v1394 = vadd.f32 %v1378, %v1391
          %v1395 = vadd.f32 %v1383, %v1391
          %v1396 = vmax.f32 %v1393, 0.0
          %v1397 = vmax.f32 %v1394, 0.0
          %v1398 = vmax.f32 %v1395, 0.0
          %v1399 = vld [vmem:[%s8] sm:$0xff]
          %v1400 = vld [vmem:[%s8 + $0x8] sm:$0xff]
          %v1401 = vld [vmem:[%s8 + $0x10] sm:$0xff]
          %v1402 = vld [vmem:[%s8 + $0x18] sm:$0xff]
          %v1403 = vld [vmem:[%s8 + $0x20] sm:$0xff]
          %v1404 = vld [vmem:[%s8 + $0x28] sm:$0xff]
          %v1405 = vld [vmem:[%s8 + $0x30] sm:$0xff]
          %v1406 = vld [vmem:[%s8 + $0x38] sm:$0xff]
          %v1407 = vld [vmem:[%s8 + $0x40] sm:$0xff]
          %v1408 = vld [vmem:[%s8 + $0x48] sm:$0xff]
          %v1409 = vld [vmem:[%s8 + $0x50] sm:$0xff]
          %v1410 = vld [vmem:[%s8 + $0x58] sm:$0xff]
          %v1411 = vld [vmem:[%s8 + $0x60] sm:$0xff]
          %v1412 = vld [vmem:[%s8 + $0x68] sm:$0xff]
          %v1413 = vld [vmem:[%s8 + $0x70] sm:$0xff]
          %v1414 = vld [vmem:[%s8 + $0x78] sm:$0xff]
          %v1415 = vld [vmem:[%s9] sm:$0x1]
          %v1417 = vlaneseq
          %v1418 = vshrl.u32 %v1417, 7
          %v1419 = vsub.s32 0, %v1418
          %v1420 = vrot.slane %v1415, %v1419
          %1422 = vmatprep.subr.mxu0 0.0
          %1423 = vmatpush1.msra.mxu0 %v1399
          %1424 = vmatprep.subr.mxu0 0.0
          %1425 = vmatpush1.msra.mxu0 %v1400
          %1426 = vmatprep.subr.mxu0 0.0
          %1427 = vmatpush1.msra.mxu0 %v1401
          %1428 = vmatprep.subr.mxu0 0.0
          %1429 = vmatpush1.msra.mxu0 %v1402
          %1430 = vmatprep.subr.mxu0 0.0
          %1431 = vmatpush1.msra.mxu0 %v1403
          %1432 = vmatprep.subr.mxu0 0.0
          %1433 = vmatpush1.msra.mxu0 %v1404
          %1434 = vmatprep.subr.mxu0 0.0
          %1435 = vmatpush1.msra.mxu0 %v1405
          %1436 = vmatprep.subr.mxu0 0.0
          %1437 = vmatpush1.msra.mxu0 %v1406
          %1438 = vmatprep.subr.mxu0 0.0
          %1439 = vmatpush1.msra.mxu0 %v1407
          %1440 = vmatprep.subr.mxu0 0.0
          %1441 = vmatpush1.msra.mxu0 %v1408
          %1442 = vmatprep.subr.mxu0 0.0
          %1443 = vmatpush1.msra.mxu0 %v1409
          %1444 = vmatprep.subr.mxu0 0.0
          %1445 = vmatpush1.msra.mxu0 %v1410
          %1446 = vmatprep.subr.mxu0 0.0
          %1447 = vmatpush1.msra.mxu0 %v1411
          %1448 = vmatprep.subr.mxu0 0.0
          %1449 = vmatpush1.msra.mxu0 %v1412
          %1450 = vmatprep.subr.mxu0 0.0
          %1451 = vmatpush1.msra.mxu0 %v1413
          %1452 = vmatprep.subr.mxu0 0.0
          %1453 = vmatpush1.msra.mxu0 %v1414
          %1454 = vmatprep.subr.mxu0 0.0
          %1455 = vmatpush1.msra.mxu0 0.0
          %1456 = vmatprep.subr.mxu0 0.0
          %1457 = vmatpush1.msra.mxu0 0.0
          %1458 = vmatprep.subr.mxu0 0.0
          %1459 = vmatpush1.msra.mxu0 0.0
          %1460 = vmatprep.subr.mxu0 0.0
          %1461 = vmatpush1.msra.mxu0 0.0
          %1462 = vmatprep.subr.mxu0 0.0
          %1463 = vmatpush1.msra.mxu0 0.0
          %1464 = vmatprep.subr.mxu0 0.0
          %1465 = vmatpush1.msra.mxu0 0.0
          %1466 = vmatprep.subr.mxu0 0.0
          %1467 = vmatpush1.msra.mxu0 0.0
          %1468 = vmatprep.subr.mxu0 0.0
          %1469 = vmatpush1.msra.mxu0 0.0
          %1470 = vmatprep.subr.mxu0 0.0
          %1471 = vmatpush1.msra.mxu0 0.0
          %1472 = vmatprep.subr.mxu0 0.0
          %1473 = vmatpush1.msra.mxu0 0.0
          %1474 = vmatprep.subr.mxu0 0.0
          %1475 = vmatpush1.msra.mxu0 0.0
          %1476 = vmatprep.subr.mxu0 0.0
          %1477 = vmatpush1.msra.mxu0 0.0
          %1478 = vmatprep.subr.mxu0 0.0
          %1479 = vmatpush1.msra.mxu0 0.0
          %1480 = vmatprep.subr.mxu0 0.0
          %1481 = vmatpush1.msra.mxu0 0.0
          %1482 = vmatprep.subr.mxu0 0.0
          %1483 = vmatpush1.msra.mxu0 0.0
          %1484 = vmatprep.subr.mxu0 0.0
          %1485 = vmatpush1.msra.mxu0 0.0
          %1486 = vmatprep.mubr.f32.mxu0 0.0
          %1487 = vmatmul.mubr.f32.gmra.mrb[0].mxu0 %v1396
          %v1488 = vpop.f32.mrb[0].mxu0
          %v1489 = vadd.f32 %v1420, %v1488
          %v1490 = vpop.f32.mrb[0].mxu0
          %1491 = vmatprep.mubr.f32.mxu0 0.0
          %1492 = vmatmul.mubr.f32.gmra.mrb[0].mxu0 %v1397
          %v1493 = vpop.f32.mrb[0].mxu0
          %v1494 = vadd.f32 %v1420, %v1493
          %v1495 = vpop.f32.mrb[0].mxu0
          %1496 = vmatprep.mubr.f32.mxu0 0.0
          %1497 = vmatmul.mubr.f32.gmra.mrb[0].mxu0 %v1398
          %v1498 = vpop.f32.mrb[0].mxu0
          %v1499 = vadd.f32 %v1420, %v1498
          %v1500 = vpop.f32.mrb[0].mxu0
          %1501 = vdwg.mxu0
          %v1502 = vmax.f32 %v1489, 0.0
          %v1503 = vmax.f32 %v1494, 0.0
          %v1504 = vmax.f32 %v1499, 0.0
          %1505 = vst [vmem:[%s454] sm:$0xff] %v1502
          %1506 = vst [vmem:[%s454 + $0x8] sm:$0xff] %v1503
          %1507 = vst [vmem:[%s454 + $0x10] sm:$0xff] %v1504
        $region88: #{tpu_custom_call.1} parent=59 // pred_fallthru
          _
        %s1508 = sand.u32 %s272, 1
        %s1509 = scalar_lea.sflag [#allocation5], %s1508
        %s1510 = sand.u32 %s272, 1
        %s1511 = smul.addr %s1510, 24
        %s1512 = scalar_lea.vmem [#allocation12], %s1511
        // Predicated region
        $region89: #{tpu_custom_call.1} parent=59 // pred_check
          %p1513 = pneg %p282
        $region90: #{tpu_custom_call.1} parent=59 // pred_check_branch
          %1515 = sbr.rel (%p1513) target = $region92
        $region91: #{tpu_custom_call.1} parent=59 // pred_region
          %s1516 = smul.u32 3, %s31
          %s1518 = ssub.s32 384, 384
          %1519 = vsyncadd %s1509, %s1518
          %s1520 = smul.addr %s1516, 128
          %s1521 = scalar_lea.hbm %s10, %s1520
          %s1522 = sshll.u32 %s1512, 4
          %s1523 = int_to_ptr.vmem [resolvable:$true] %s1522
          %1528 = dma.vmem_to_hbm [thread:$0]  %s1523, 384, %s1521, %s1509, 128, 128, 8
        $region92: #{tpu_custom_call.1} parent=59 // pred_fallthru
          _
      $region60: #{tpu_custom_call.1} parent=5 // pred_fallthru
        _
      %p1529 = scmp.le.s32.totalorder 2, %s22
      // Predicated region
      $region93: #{tpu_custom_call.1} parent=5 // pred_check
        %p1530 = pneg %p1529
      $region94: #{tpu_custom_call.1} parent=5 // pred_check_branch
        %1532 = sbr.rel (%p1530) target = $region96
      $region95: #{tpu_custom_call.1} parent=5 // pred_region
        %s1533 = ssub.s32 %s22, 2
        // Predicated region
        $region97: #{tpu_custom_call.1} parent=95 // pred_check
          %p1534 = pneg %p288
        $region98: #{tpu_custom_call.1} parent=95 // pred_check_branch
          %1536 = sbr.rel (%p1534) target = $region100
        $region99: #{tpu_custom_call.1} parent=95 // pred_region
          %s1537 = sand.u32 %s273, 1
          %s1538 = scalar_lea.sflag [#allocation5], %s1537
          %s1539 = sand.u32 %s273, 1
          %s1540 = smul.addr %s1539, 24
          %s1541 = scalar_lea.vmem [#allocation12], %s1540
          %1542 = dma.done %s1538, 384
        $region100: #{tpu_custom_call.1} parent=95 // pred_fallthru
          _
      $region96: #{tpu_custom_call.1} parent=5 // pred_fallthru
        _
    $region6: #{tpu_custom_call.1} parent=1 // loop_footer
      %s26 = sadd.s32 1, %s22
    $region7: #{tpu_custom_call.1} parent=1 // loop_footer_branch
      %21 = sbr.rel target = $region3
    $region8: #{tpu_custom_call.1} parent=1 // loop_exit
      _
    %1543 = vsyncpa [#allocation4], 1
    %s1544 = scalar_lea.sflag [#allocation4], 1
    %1545 = vsyncpa %s1544, 1
    %1546 = vsyncpa [#allocation7], 1
    %1547 = vsyncpa [#allocation10], 1
    %1548 = vsyncpa [#allocation5], 1
    %s1549 = scalar_lea.sflag [#allocation5], 1
    %1550 = vsyncpa %s1549, 1

</llo_original>
